<compile_context>
chip_gen: v7x
topology: tpu7x:2x2x1
jax: 0.10.0
libtpu: 0.0.40
codegen_flags: <defaults>
</compile_context>

<pallas_src>
import functools

import jax
import jax.numpy as jnp
from jax.experimental import pallas as pl
from jax.experimental.pallas import tpu as pltpu

OBS_DIM = 4        # e.g. CartPole observation_space.shape[0]
NUM_ACTIONS = 2    # e.g. CartPole action_space.n
HIDDEN = 128
BATCH = 2
LANES = 128        # TPU lane width; layer-3 outputs are padded to this
NEG_BIG = -3.0e38  # finite "minus infinity": padded Q lanes can never win the argmax
TB_CAP = 2048      # max batch-tile rows (v5e scoped-VMEM safety margin)


def _round_up(v, m):
    return ((v + m - 1) // m) * m


def _dqn_core(x_ref, w1_ref, b1_ref, w2_ref, b2_ref, w3_ref, b3_ref, mm_precision):
    """Shared 3-layer MLP + greedy argmax. Returns (q_f32 (TB,128), act_i32 (TB,1))."""
    # ---- Layer 1 (K = obs_dim, tiny): VPU broadcast-MACs, bias folded in, all f32 ----
    x = x_ref[...]                               # (TB, K) f32
    w1 = w1_ref[...]                             # (K, HIDDEN) f32
    h1 = b1_ref[...] + x[:, 0:1] * w1[0:1, :]
    for k in range(1, x.shape[1]):               # static unroll; K is tiny
        h1 = h1 + x[:, k:k + 1] * w1[k:k + 1, :]
    h1 = jnp.maximum(h1, 0.0)

    # ---- Layers 2 & 3: MXU matmuls (bf16 operands by default), f32 accumulation ----
    mm_dtype = w2_ref.dtype
    h2 = jnp.dot(h1.astype(mm_dtype), w2_ref[...],
                 preferred_element_type=jnp.float32, precision=mm_precision)
    h2 = jnp.maximum(h2 + b2_ref[...], 0.0)
    q = jnp.dot(h2.astype(mm_dtype), w3_ref[...],
                preferred_element_type=jnp.float32, precision=mm_precision)
    q = q + b3_ref[...]        # padded lanes carry NEG_BIG via the bias -> masked for free

    # ---- Fused greedy argmax (first index attaining the row max, as torch.argmax) ----
    col = jax.lax.broadcasted_iota(jnp.int32, q.shape, 1)
    row_max = jnp.max(q, axis=1, keepdims=True)
    act = jnp.min(jnp.where(q == row_max, col, q.shape[1]), axis=1, keepdims=True)
    return q, act.astype(jnp.int32)


def _dqn_kernel_q_act(x_ref, w1_ref, b1_ref, w2_ref, b2_ref, w3_ref, b3_ref,
                      q_ref, act_ref, *, mm_precision):
    q, act = _dqn_core(x_ref, w1_ref, b1_ref, w2_ref, b2_ref, w3_ref, b3_ref, mm_precision)
    q_ref[...] = q.astype(q_ref.dtype)           # lane-dense (TB, 128) store
    act_ref[...] = act


def _dqn_kernel_act_only(x_ref, w1_ref, b1_ref, w2_ref, b2_ref, w3_ref, b3_ref,
                         act_ref, *, mm_precision):
    _, act = _dqn_core(x_ref, w1_ref, b1_ref, w2_ref, b2_ref, w3_ref, b3_ref, mm_precision)
    act_ref[...] = act


def dqn_forward(x, params, *, tb=None, matmul_dtype=jnp.bfloat16,
                q_dtype=jnp.bfloat16, return_q=True):
    """Fused DQN MLP forward.

    Returns (q_values (B, num_actions) in q_dtype, greedy_actions (B,) int32) when
    return_q=True; with return_q=False returns only the greedy actions (no Q writeback).
    tb=None picks a near-whole-batch tile in (at most) 2 grid steps, capped at TB_CAP.
    """
    w1, b1, w2, b2, w3, b3 = params              # weights stored (in_features, out_features)
    b1, b2, b3 = (jnp.asarray(b).reshape(1, -1) for b in (b1, b2, b3))
    B, obs_dim = x.shape
    hidden = w1.shape[1]
    num_actions = w3.shape[1]

    # Lane-dense layer 3: zero-pad weights to 128 output columns; padded bias lanes get
    # a large finite negative so they can never win the fused argmax (no in-kernel mask).
    w3p = jnp.zeros((hidden, LANES), w3.dtype).at[:, :num_actions].set(w3)
    b3p = jnp.full((1, LANES), NEG_BIG, jnp.float32).at[:, :num_actions].set(b3[0])

    w2m = w2.astype(matmul_dtype)
    w3m = w3p.astype(matmul_dtype)
    mm_precision = (jax.lax.Precision.HIGHEST
                    if jnp.dtype(matmul_dtype) == jnp.dtype(jnp.float32) else None)

    # Batch tiling: aim for <=2 grid steps (two balanced steps shard over v7x's two
    # TensorCores); cap the tile so tiles + intermediates stay well inside v5e VMEM.
    b8 = _round_up(B, 8)
    if tb is None:
        tb_eff = 8 if b8 <= 8 else min(TB_CAP, _round_up(pl.cdiv(b8, 2), 8))
    else:
        tb_eff = max(8, min(_round_up(tb, 8), b8))
    b_pad = _round_up(b8, tb_eff)
    xp = x if b_pad == B else jnp.pad(x, ((0, b_pad - B), (0, 0)))

    resident = lambda i: (0, 0)        # weights / biases stay VMEM-resident across the grid

    in_specs = [
        pl.BlockSpec((tb_eff, obs_dim), lambda i: (i, 0)),   # x
        pl.BlockSpec((obs_dim, hidden), resident),           # w1
        pl.BlockSpec((1, hidden), resident),                 # b1
        pl.BlockSpec((hidden, hidden), resident),            # w2
        pl.BlockSpec((1, hidden), resident),                 # b2
        pl.BlockSpec((hidden, LANES), resident),             # w3 (padded)
        pl.BlockSpec((1, LANES), resident),                  # b3 (padded, masked)
    ]

    itemsize = lambda dt: jnp.dtype(dt).itemsize
    flops = 2 * b_pad * hidden * (obs_dim + hidden + LANES)
    bytes_accessed = (b_pad * obs_dim * 4 + b_pad * 4
                      + (obs_dim * hidden + 2 * hidden + LANES) * 4
                      + (hidden * hidden + hidden * LANES) * itemsize(matmul_dtype))
    if return_q:
        bytes_accessed += b_pad * LANES * itemsize(q_dtype)
    cost = pl.CostEstimate(flops=flops, transcendentals=0, bytes_accessed=bytes_accessed)

    if return_q:
        kernel = functools.partial(_dqn_kernel_q_act, mm_precision=mm_precision)
        out_shape = (jax.ShapeDtypeStruct((b_pad, LANES), q_dtype),
                     jax.ShapeDtypeStruct((b_pad, 1), jnp.int32))
        out_specs = [pl.BlockSpec((tb_eff, LANES), lambda i: (i, 0)),   # Q slab (lane-dense)
                     pl.BlockSpec((tb_eff, 1), lambda i: (i, 0))]       # greedy actions
    else:
        kernel = functools.partial(_dqn_kernel_act_only, mm_precision=mm_precision)
        out_shape = jax.ShapeDtypeStruct((b_pad, 1), jnp.int32)
        out_specs = pl.BlockSpec((tb_eff, 1), lambda i: (i, 0))

    out = pl.pallas_call(
        kernel,
        out_shape=out_shape,
        grid_spec=pltpu.PrefetchScalarGridSpec(
            num_scalar_prefetch=0,
            grid=(b_pad // tb_eff,),
            in_specs=in_specs,
            out_specs=out_specs,
        ),
        compiler_params=pltpu.CompilerParams(
            dimension_semantics=("parallel",)),   # shards batch grid over v7x's 2 TCs
        cost_estimate=cost,
    )(xp, w1, b1, w2m, b2, w3m, b3p)

    if return_q:
        q_pad, act_pad = out
        return q_pad[:B, :num_actions], act_pad[:B, 0]
    return out[:B, 0]


def init_params(key):
    """Deterministic init matching PyTorch nn.Linear default:
    U(-1/sqrt(fan_in), 1/sqrt(fan_in)) for both weights and biases."""
    def linear(key, fan_in, fan_out):
        kw, kb = jax.random.split(key)
        bound = 1.0 / jnp.sqrt(jnp.float32(fan_in))
        w = jax.random.uniform(kw, (fan_in, fan_out), jnp.float32, -bound, bound)
        b = jax.random.uniform(kb, (1, fan_out), jnp.float32, -bound, bound)
        return w, b

    k1, k2, k3 = jax.random.split(key, 3)
    w1, b1 = linear(k1, OBS_DIM, HIDDEN)
    w2, b2 = linear(k2, HIDDEN, HIDDEN)
    w3, b3 = linear(k3, HIDDEN, NUM_ACTIONS)
    return (w1, b1, w2, b2, w3, b3)


def dqn_reference(x, params):
    w1, b1, w2, b2, w3, b3 = params
    hp = jax.lax.Precision.HIGHEST
    h1 = jnp.maximum(jnp.dot(x, w1, precision=hp) + b1, 0.0)
    h2 = jnp.maximum(jnp.dot(h1, w2, precision=hp) + b2, 0.0)
    return jnp.dot(h2, w3, precision=hp) + b3


if __name__ == "__main__":
    # TODO(synk): epsilon-greedy random-exploration branch of DQN.act stays host-side (python RNG).
    key = jax.random.PRNGKey(0)
    k_params, k_x, k_xl = jax.random.split(key, 3)
    params = init_params(k_params)

    # Small shapes consistent with the module (CartPole-like): batch=2, obs_dim=4.
    x = jax.random.normal(k_x, (BATCH, OBS_DIM), jnp.float32)
    q_ref = dqn_reference(x, params)

    # f32 MXU path (precision=HIGHEST): tight check against the JAX reference.
    q32, a32 = dqn_forward(x, params, matmul_dtype=jnp.float32, q_dtype=jnp.float32)
    jax.block_until_ready((q32, a32))
    assert q32.shape == (BATCH, NUM_ACTIONS) and a32.shape == (BATCH,)
    assert jnp.allclose(q32, q_ref, atol=1e-4, rtol=1e-4), "f32 mismatch vs JAX reference"
    assert jnp.array_equal(a32, jnp.argmax(q_ref, axis=1)), "f32 greedy action mismatch"

    # Default fast path: bf16 MXU operands, bf16 Q slab (halves the dominant writeback).
    q16, a16 = dqn_forward(x, params)
    jax.block_until_ready((q16, a16))
    q16f = q16.astype(jnp.float32)
    assert q16.dtype == jnp.bfloat16 and q16.shape == (BATCH, NUM_ACTIONS)
    assert jnp.allclose(q16f, q_ref, atol=5e-2, rtol=5e-2), "bf16 mismatch vs JAX reference"
    # Tie-safe consistency: the chosen action attains the row max of the stored Q.
    chosen = jnp.take_along_axis(q16f, a16[:, None], axis=1)[:, 0]
    assert jnp.all(chosen >= q16f.max(axis=1) - 1e-3), "fused argmax inconsistent with Q"

    # Act-only inference path (no Q writeback at all).
    a_only = dqn_forward(x, params, return_q=False)
    jax.block_until_ready(a_only)
    assert a_only.shape == (BATCH,)
    assert jnp.array_equal(a_only, a16), "act-only path disagrees with full path"

    # Larger batch exercises the 2-step ("parallel") grid and batch padding.
    xl = jax.random.normal(k_xl, (300, OBS_DIM), jnp.float32)
    ql, al = dqn_forward(xl, params)
    jax.block_until_ready((ql, al))
    ql_ref = dqn_reference(xl, params)
    assert ql.shape == (300, NUM_ACTIONS) and al.shape == (300,)
    assert jnp.allclose(ql.astype(jnp.float32), ql_ref, atol=5e-2, rtol=5e-2), \
        "large-batch bf16 mismatch vs JAX reference"

    print("KERNEL_OK")
</pallas_src>

<mosaic_0001>
module attributes {stable_mosaic.version = 11 : i64} {
  func.func @_dqn_kernel_q_act(%arg0: i32, %arg1: memref<8x4xf32, #tpu.memory_space<vmem>>, %arg2: memref<4x128xf32, #tpu.memory_space<vmem>>, %arg3: memref<1x128xf32, #tpu.memory_space<vmem>>, %arg4: memref<128x128xf32, #tpu.memory_space<vmem>>, %arg5: memref<1x128xf32, #tpu.memory_space<vmem>>, %arg6: memref<128x128xf32, #tpu.memory_space<vmem>>, %arg7: memref<1x128xf32, #tpu.memory_space<vmem>>, %arg8: memref<8x128xf32, #tpu.memory_space<vmem>>, %arg9: memref<8x1xi32, #tpu.memory_space<vmem>>) attributes {dimension_semantics = [#tpu.dimension_semantics<parallel>], iteration_bounds = array<i64: 1>, scalar_prefetch = 0 : i64, scratch_operands = 0 : i64, tpu.core_type = #tpu.core_type<tc>, window_params = [{transform_indices = @transform_0, window_bounds = array<i64: 8, 4>}, {pipeline_mode = #tpu.pipeline_mode<synchronous>, transform_indices = @transform_1, window_bounds = array<i64: 4, 128>}, {pipeline_mode = #tpu.pipeline_mode<synchronous>, transform_indices = @transform_2, window_bounds = array<i64: 1, 128>}, {pipeline_mode = #tpu.pipeline_mode<synchronous>, transform_indices = @transform_3, window_bounds = array<i64: 128, 128>}, {pipeline_mode = #tpu.pipeline_mode<synchronous>, transform_indices = @transform_4, window_bounds = array<i64: 1, 128>}, {pipeline_mode = #tpu.pipeline_mode<synchronous>, transform_indices = @transform_5, window_bounds = array<i64: 128, 128>}, {pipeline_mode = #tpu.pipeline_mode<synchronous>, transform_indices = @transform_6, window_bounds = array<i64: 1, 128>}, {transform_indices = @transform_7, window_bounds = array<i64: 8, 128>}, {transform_indices = @transform_8, window_bounds = array<i64: 8, 1>}]} {
    %c0 = arith.constant 0 : index
    %c0_0 = arith.constant 0 : index
    %0 = vector.load %arg1[%c0, %c0_0] : memref<8x4xf32, #tpu.memory_space<vmem>>, vector<8x4xf32>
    %c0_1 = arith.constant 0 : index
    %c0_2 = arith.constant 0 : index
    %1 = vector.load %arg2[%c0_1, %c0_2] : memref<4x128xf32, #tpu.memory_space<vmem>>, vector<4x128xf32>
    %c0_3 = arith.constant 0 : index
    %c0_4 = arith.constant 0 : index
    %2 = vector.load %arg3[%c0_3, %c0_4] : memref<1x128xf32, #tpu.memory_space<vmem>>, vector<1x128xf32>
    %3 = vector.extract_strided_slice %0 {offsets = [0, 0], sizes = [8, 1], strides = [1, 1]} : vector<8x4xf32> to vector<8x1xf32>
    %4 = vector.extract_strided_slice %1 {offsets = [0, 0], sizes = [1, 128], strides = [1, 1]} : vector<4x128xf32> to vector<1x128xf32>
    %5 = vector.broadcast %3 : vector<8x1xf32> to vector<8x128xf32>
    %6 = vector.broadcast %4 : vector<1x128xf32> to vector<8x128xf32>
    %7 = arith.mulf %5, %6 : vector<8x128xf32>
    %8 = vector.broadcast %2 : vector<1x128xf32> to vector<8x128xf32>
    %9 = arith.addf %8, %7 : vector<8x128xf32>
    %10 = vector.extract_strided_slice %0 {offsets = [0, 1], sizes = [8, 1], strides = [1, 1]} : vector<8x4xf32> to vector<8x1xf32>
    %11 = vector.extract_strided_slice %1 {offsets = [1, 0], sizes = [1, 128], strides = [1, 1]} : vector<4x128xf32> to vector<1x128xf32>
    %12 = vector.broadcast %10 : vector<8x1xf32> to vector<8x128xf32>
    %13 = vector.broadcast %11 : vector<1x128xf32> to vector<8x128xf32>
    %14 = arith.mulf %12, %13 : vector<8x128xf32>
    %15 = arith.addf %9, %14 : vector<8x128xf32>
    %16 = vector.extract_strided_slice %0 {offsets = [0, 2], sizes = [8, 1], strides = [1, 1]} : vector<8x4xf32> to vector<8x1xf32>
    %17 = vector.extract_strided_slice %1 {offsets = [2, 0], sizes = [1, 128], strides = [1, 1]} : vector<4x128xf32> to vector<1x128xf32>
    %18 = vector.broadcast %16 : vector<8x1xf32> to vector<8x128xf32>
    %19 = vector.broadcast %17 : vector<1x128xf32> to vector<8x128xf32>
    %20 = arith.mulf %18, %19 : vector<8x128xf32>
    %21 = arith.addf %15, %20 : vector<8x128xf32>
    %22 = vector.extract_strided_slice %0 {offsets = [0, 3], sizes = [8, 1], strides = [1, 1]} : vector<8x4xf32> to vector<8x1xf32>
    %23 = vector.extract_strided_slice %1 {offsets = [3, 0], sizes = [1, 128], strides = [1, 1]} : vector<4x128xf32> to vector<1x128xf32>
    %24 = vector.broadcast %22 : vector<8x1xf32> to vector<8x128xf32>
    %25 = vector.broadcast %23 : vector<1x128xf32> to vector<8x128xf32>
    %26 = arith.mulf %24, %25 : vector<8x128xf32>
    %27 = arith.addf %21, %26 : vector<8x128xf32>
    %cst = arith.constant 0.000000e+00 : f32
    %28 = vector.broadcast %cst : f32 to vector<8x128xf32>
    %29 = arith.maximumf %27, %28 : vector<8x128xf32>
    %c0_5 = arith.constant 0 : index
    %c0_6 = arith.constant 0 : index
    %30 = vector.load %arg4[%c0_5, %c0_6] : memref<128x128xf32, #tpu.memory_space<vmem>>, vector<128x128xf32>
    %cst_7 = arith.constant dense<0.000000e+00> : vector<8x128xf32>
    %31 = tpu.matmul %29, %30, %cst_7 {dimension_numbers = #tpu.dot_dimension_numbers<[1], [0], [0], [1], [0, 0, 1, 1], [], []>, precision = #tpu.contract_precision<fp32>} : vector<8x128xf32>, vector<128x128xf32>, vector<8x128xf32> -> vector<8x128xf32>
    %c0_8 = arith.constant 0 : index
    %c0_9 = arith.constant 0 : index
    %32 = vector.load %arg5[%c0_8, %c0_9] : memref<1x128xf32, #tpu.memory_space<vmem>>, vector<1x128xf32>
    %33 = vector.broadcast %32 : vector<1x128xf32> to vector<8x128xf32>
    %34 = arith.addf %31, %33 : vector<8x128xf32>
    %cst_10 = arith.constant 0.000000e+00 : f32
    %35 = vector.broadcast %cst_10 : f32 to vector<8x128xf32>
    %36 = arith.maximumf %34, %35 : vector<8x128xf32>
    %c0_11 = arith.constant 0 : index
    %c0_12 = arith.constant 0 : index
    %37 = vector.load %arg6[%c0_11, %c0_12] : memref<128x128xf32, #tpu.memory_space<vmem>>, vector<128x128xf32>
    %cst_13 = arith.constant dense<0.000000e+00> : vector<8x128xf32>
    %38 = tpu.matmul %36, %37, %cst_13 {dimension_numbers = #tpu.dot_dimension_numbers<[1], [0], [0], [1], [0, 0, 1, 1], [], []>, precision = #tpu.contract_precision<fp32>} : vector<8x128xf32>, vector<128x128xf32>, vector<8x128xf32> -> vector<8x128xf32>
    %c0_14 = arith.constant 0 : index
    %c0_15 = arith.constant 0 : index
    %39 = vector.load %arg7[%c0_14, %c0_15] : memref<1x128xf32, #tpu.memory_space<vmem>>, vector<1x128xf32>
    %40 = vector.broadcast %39 : vector<1x128xf32> to vector<8x128xf32>
    %41 = arith.addf %38, %40 : vector<8x128xf32>
    %42 = tpu.iota {dimensions = array<i32: 1>} : vector<8x128xi32>
    %cst_16 = arith.constant dense<0xFF800000> : vector<8xf32>
    %43 = vector.multi_reduction <maximumf>, %41, %cst_16 [1] : vector<8x128xf32> to vector<8xf32>
    %44 = vector.shape_cast %43 : vector<8xf32> to vector<8x1xf32>
    %45 = vector.broadcast %44 : vector<8x1xf32> to vector<8x128xf32>
    %46 = arith.cmpf oeq, %41, %45 : vector<8x128xf32>
    %c128_i32 = arith.constant 128 : i32
    %47 = vector.broadcast %c128_i32 : i32 to vector<8x128xi32>
    %48 = arith.select %46, %42, %47 : vector<8x128xi1>, vector<8x128xi32>
    %cst_17 = arith.constant dense<2147483647> : vector<8xi32>
    %49 = vector.multi_reduction <minsi>, %48, %cst_17 [1] : vector<8x128xi32> to vector<8xi32>
    %50 = vector.shape_cast %49 : vector<8xi32> to vector<8x1xi32>
    %c0_18 = arith.constant 0 : index
    %c0_19 = arith.constant 0 : index
    %51 = vector.load %arg8[%c0_18, %c0_19] : memref<8x128xf32, #tpu.memory_space<vmem>>, vector<8x128xf32>
    tpu.vector_store %arg8[%c0_18, %c0_19], %41 {strides = array<i32>} : memref<8x128xf32, #tpu.memory_space<vmem>>, vector<8x128xf32>,
    %c0_20 = arith.constant 0 : index
    %c0_21 = arith.constant 0 : index
    %52 = vector.load %arg9[%c0_20, %c0_21] : memref<8x1xi32, #tpu.memory_space<vmem>>, vector<8x1xi32>
    tpu.vector_store %arg9[%c0_20, %c0_21], %50 {strides = array<i32>} : memref<8x1xi32, #tpu.memory_space<vmem>>, vector<8x1xi32>,
    return
  }
  func.func @transform_0(%arg0: i32) -> (i32, i32) {
    %c0_i32 = arith.constant 0 : i32
    %c0_i32_0 = arith.constant 0 : i32
    return %arg0, %c0_i32 : i32, i32
  }
  func.func @transform_1(%arg0: i32) -> (i32, i32) {
    %c0_i32 = arith.constant 0 : i32
    %c0_i32_0 = arith.constant 0 : i32
    %c0_i32_1 = arith.constant 0 : i32
    return %c0_i32, %c0_i32_0 : i32, i32
  }
  func.func @transform_2(%arg0: i32) -> (i32, i32) {
    %c0_i32 = arith.constant 0 : i32
    %c0_i32_0 = arith.constant 0 : i32
    %c0_i32_1 = arith.constant 0 : i32
    return %c0_i32, %c0_i32_0 : i32, i32
  }
  func.func @transform_3(%arg0: i32) -> (i32, i32) {
    %c0_i32 = arith.constant 0 : i32
    %c0_i32_0 = arith.constant 0 : i32
    %c0_i32_1 = arith.constant 0 : i32
    return %c0_i32, %c0_i32_0 : i32, i32
  }
  func.func @transform_4(%arg0: i32) -> (i32, i32) {
    %c0_i32 = arith.constant 0 : i32
    %c0_i32_0 = arith.constant 0 : i32
    %c0_i32_1 = arith.constant 0 : i32
    return %c0_i32, %c0_i32_0 : i32, i32
  }
  func.func @transform_5(%arg0: i32) -> (i32, i32) {
    %c0_i32 = arith.constant 0 : i32
    %c0_i32_0 = arith.constant 0 : i32
    %c0_i32_1 = arith.constant 0 : i32
    return %c0_i32, %c0_i32_0 : i32, i32
  }
  func.func @transform_6(%arg0: i32) -> (i32, i32) {
    %c0_i32 = arith.constant 0 : i32
    %c0_i32_0 = arith.constant 0 : i32
    %c0_i32_1 = arith.constant 0 : i32
    return %c0_i32, %c0_i32_0 : i32, i32
  }
  func.func @transform_7(%arg0: i32) -> (i32, i32) {
    %c0_i32 = arith.constant 0 : i32
    %c0_i32_0 = arith.constant 0 : i32
    return %arg0, %c0_i32 : i32, i32
  }
  func.func @transform_8(%arg0: i32) -> (i32, i32) {
    %c0_i32 = arith.constant 0 : i32
    %c0_i32_0 = arith.constant 0 : i32
    return %arg0, %c0_i32 : i32, i32
  }
}

</mosaic_0001>

<llo_original>
// kernel: tpu_custom_call.1
$region0: #{tpu_custom_call.1}
  #allocation0 [shape = 'u32[]', space=smem, size = 0x4, offset = 0x4, fixed_abs, tag = 'smem constant byte address 0x4 - core index']
  #allocation1 [shape = 'u32[144,128]{1,0:T(1,128)}', space=vmem, size = 0x12000, scoped, tag = 'internal scratch']
  %s0 = inlined_call_operand.vmem [shape: f32[8,4], index: 0, kind: input, shape index: {}]
  %s1 = inlined_call_operand.vmem [shape: f32[4,128], index: 1, kind: input, shape index: {}]
  %s2 = inlined_call_operand.vmem [shape: f32[1,128], index: 2, kind: input, shape index: {}]
  %s3 = inlined_call_operand.hbm [shape: f32[128,128], index: 3, kind: input, shape index: {}]
  %s4 = inlined_call_operand.vmem [shape: f32[1,128], index: 4, kind: input, shape index: {}]
  %s5 = inlined_call_operand.hbm [shape: f32[128,128], index: 5, kind: input, shape index: {}]
  %s6 = inlined_call_operand.vmem [shape: f32[1,128], index: 6, kind: input, shape index: {}]
  %s7 = inlined_call_operand.hbm [shape: f32[8,128], index: 7, kind: output, shape index: {0}]
  %s8 = inlined_call_operand.vmem [shape: s32[8,1], index: 8, kind: output, shape index: {1}]
  %9 = xla_tuple %s7, %s8
  %s10 = sld [smem:[#allocation0]]
  $region54: #{tpu_custom_call.1} parent=0
    _
  %s12 = ssub.s32 1, %s10
  %s13 = scalar_select 0, %s12, %s10
  $region1: #{tpu_custom_call.1} parent=0
    #allocation2 [shape = 'u8[65536]{0}', space=vmem, size = 0x10000, scoped, tag = 'input window, operand 3, single buffered']
    #allocation3 [shape = 's32[1]{0}', space=sflag, size = 0x4, scoped, tag = 'scoped memory for tpu_custom_call.1']
    #allocation4 [shape = 's32[1]{0}', space=sflag, size = 0x4, scoped, tag = 'scoped memory for tpu_custom_call.1']
    #allocation5 [shape = 'u8[65536]{0}', space=vmem, size = 0x10000, scoped, tag = 'input window, operand 5, single buffered']
    #allocation6 [shape = 's32[1]{0}', space=sflag, size = 0x4, scoped, tag = 'scoped memory for tpu_custom_call.1']
    #allocation7 [shape = 'u8[4096]{0}', space=vmem, size = 0x1000, scoped, tag = 'output window, operand 0, single buffered']
    %14 = vsyncpa [#allocation3], 0
    %15 = vsyncpa [#allocation6], 0
    %16 = vsyncpa [#allocation4], 0
    // Predicated region
    $region2: #{tpu_custom_call.1} parent=1 // pred_check
      _
    $region3: #{tpu_custom_call.1} parent=1 // pred_check_branch
      %18 = sbr.rel (0) target = $region5
    $region4: #{tpu_custom_call.1} parent=1 // pred_region
      _
    $region5: #{tpu_custom_call.1} parent=1 // pred_fallthru
      _
    // Predicated region
    $region6: #{tpu_custom_call.1} parent=1 // pred_check
      _
    $region7: #{tpu_custom_call.1} parent=1 // pred_check_branch
      %20 = sbr.rel (0) target = $region9
    $region8: #{tpu_custom_call.1} parent=1 // pred_region
      _
    $region9: #{tpu_custom_call.1} parent=1 // pred_fallthru
      _
    // Predicated region
    $region10: #{tpu_custom_call.1} parent=1 // pred_check
      _
    $region11: #{tpu_custom_call.1} parent=1 // pred_check_branch
      %22 = sbr.rel (0) target = $region13
    $region12: #{tpu_custom_call.1} parent=1 // pred_region
      _
    $region13: #{tpu_custom_call.1} parent=1 // pred_fallthru
      _
    // Predicated region
    $region14: #{tpu_custom_call.1} parent=1 // pred_check
      _
    $region15: #{tpu_custom_call.1} parent=1 // pred_check_branch
      %24 = sbr.rel (0) target = $region17
    $region16: #{tpu_custom_call.1} parent=1 // pred_region
      %s26 = ssub.s32 2048, 2048
      %27 = vsyncadd [#allocation3], %s26
      %s28 = sshll.u32 [#allocation2], 4
      %s29 = int_to_ptr.vmem [resolvable:$true] %s28
      %34 = dma.hbm_to_vmem [thread:$0]  %s3, 2048, %s29, [#allocation3], 128, 128, 8
    $region17: #{tpu_custom_call.1} parent=1 // pred_fallthru
      _
    // Predicated region
    $region18: #{tpu_custom_call.1} parent=1 // pred_check
      _
    $region19: #{tpu_custom_call.1} parent=1 // pred_check_branch
      %36 = sbr.rel (0) target = $region21
    $region20: #{tpu_custom_call.1} parent=1 // pred_region
      _
    $region21: #{tpu_custom_call.1} parent=1 // pred_fallthru
      _
    // Predicated region
    $region22: #{tpu_custom_call.1} parent=1 // pred_check
      _
    $region23: #{tpu_custom_call.1} parent=1 // pred_check_branch
      %38 = sbr.rel (0) target = $region25
    $region24: #{tpu_custom_call.1} parent=1 // pred_region
      %s40 = ssub.s32 2048, 2048
      %41 = vsyncadd [#allocation6], %s40
      %s42 = sshll.u32 [#allocation5], 4
      %s43 = int_to_ptr.vmem [resolvable:$true] %s42
      %48 = dma.hbm_to_vmem [thread:$0]  %s5, 2048, %s43, [#allocation6], 128, 128, 8
    $region25: #{tpu_custom_call.1} parent=1 // pred_fallthru
      _
    // Predicated region
    $region26: #{tpu_custom_call.1} parent=1 // pred_check
      _
    $region27: #{tpu_custom_call.1} parent=1 // pred_check_branch
      %50 = sbr.rel (0) target = $region29
    $region28: #{tpu_custom_call.1} parent=1 // pred_region
      _
    $region29: #{tpu_custom_call.1} parent=1 // pred_fallthru
      _
    // Predicated region
    $region30: #{tpu_custom_call.1} parent=1 // pred_check
      _
    $region31: #{tpu_custom_call.1} parent=1 // pred_check_branch
      %52 = sbr.rel (0) target = $region33
    $region32: #{tpu_custom_call.1} parent=1 // pred_region
      %53 = dma.done [#allocation3], 2048
    $region33: #{tpu_custom_call.1} parent=1 // pred_fallthru
      _
    // Predicated region
    $region34: #{tpu_custom_call.1} parent=1 // pred_check
      _
    $region35: #{tpu_custom_call.1} parent=1 // pred_check_branch
      %55 = sbr.rel (0) target = $region37
    $region36: #{tpu_custom_call.1} parent=1 // pred_region
      %56 = dma.done [#allocation6], 2048
    $region37: #{tpu_custom_call.1} parent=1 // pred_fallthru
      _
    %v57 = vld [vmem:[%s0] sm:$0xff]
    %v58 = vld [vmem:[%s1] sm:$0xf]
    %v59 = vld [vmem:[%s2] sm:$0x1]
    %61 = vset.pattern.permute.xlu0 0
    %62 = vperm.xlu0 %61, %v57
    %v63 = vpop.permute.xlu0 %62
    %v65 = vlaneseq
    %v66 = vshrl.u32 %v65, 7
    %v67 = vsub.s32 0, %v66
    %v68 = vrot.slane %v58, %v67
    %v69 = vmul.f32 %v63, %v68
    %v71 = vlaneseq
    %v72 = vshrl.u32 %v71, 7
    %v73 = vsub.s32 0, %v72
    %v74 = vrot.slane %v59, %v73
    %v76 = vadd.f32 %v74, %v69
    %77 = vset.pattern.permute.xlu0 1
    %78 = vperm.xlu0 %77, %v57
    %v79 = vpop.permute.xlu0 %78
    %v81 = vlaneseq
    %v82 = vshrl.u32 %v81, 7
    %v83 = vsub.s32 1, %v82
    %v84 = vrot.slane %v58, %v83
    %v85 = vmul.f32 %v79, %v84
    %v86 = vadd.f32 %v76, %v85
    %87 = vset.pattern.permute.xlu0 2
    %88 = vperm.xlu0 %87, %v57
    %v89 = vpop.permute.xlu0 %88
    %v91 = vlaneseq
    %v92 = vshrl.u32 %v91, 7
    %v93 = vsub.s32 2, %v92
    %v94 = vrot.slane %v58, %v93
    %v95 = vmul.f32 %v89, %v94
    %v96 = vadd.f32 %v86, %v95
    %97 = vset.pattern.permute.xlu0 3
    %98 = vperm.xlu0 %97, %v57
    %v99 = vpop.permute.xlu0 %98
    %v101 = vlaneseq
    %v102 = vshrl.u32 %v101, 7
    %v103 = vsub.s32 3, %v102
    %v104 = vrot.slane %v58, %v103
    %v105 = vmul.f32 %v99, %v104
    %v106 = vadd.f32 %v96, %v105
    %v107 = vmax.f32 %v106, 0.0
    %v108 = vld [vmem:[#allocation2] sm:$0xff]
    %v109 = vld [vmem:[#allocation2 + $0x8] sm:$0xff]
    %v110 = vld [vmem:[#allocation2 + $0x10] sm:$0xff]
    %v111 = vld [vmem:[#allocation2 + $0x18] sm:$0xff]
    %v112 = vld [vmem:[#allocation2 + $0x20] sm:$0xff]
    %v113 = vld [vmem:[#allocation2 + $0x28] sm:$0xff]
    %v114 = vld [vmem:[#allocation2 + $0x30] sm:$0xff]
    %v115 = vld [vmem:[#allocation2 + $0x38] sm:$0xff]
    %v116 = vld [vmem:[#allocation2 + $0x40] sm:$0xff]
    %v117 = vld [vmem:[#allocation2 + $0x48] sm:$0xff]
    %v118 = vld [vmem:[#allocation2 + $0x50] sm:$0xff]
    %v119 = vld [vmem:[#allocation2 + $0x58] sm:$0xff]
    %v120 = vld [vmem:[#allocation2 + $0x60] sm:$0xff]
    %v121 = vld [vmem:[#allocation2 + $0x68] sm:$0xff]
    %v122 = vld [vmem:[#allocation2 + $0x70] sm:$0xff]
    %v123 = vld [vmem:[#allocation2 + $0x78] sm:$0xff]
    %v124 = vld [vmem:[%s4] sm:$0x1]
    %v126 = vlaneseq
    %v127 = vshrl.u32 %v126, 7
    %v128 = vsub.s32 0, %v127
    %v129 = vrot.slane %v124, %v128
    %131 = vmatprep.subr.mxu0 0.0
    %v132 = vand.u32 %v108, 4294901760
    %133 = vmatpush1.msra.mxu0 %v132
    %134 = vmatprep.subr.mxu0 0.0
    %v135 = vand.u32 %v109, 4294901760
    %136 = vmatpush1.msra.mxu0 %v135
    %137 = vmatprep.subr.mxu0 0.0
    %v138 = vand.u32 %v110, 4294901760
    %139 = vmatpush1.msra.mxu0 %v138
    %140 = vmatprep.subr.mxu0 0.0
    %v141 = vand.u32 %v111, 4294901760
    %142 = vmatpush1.msra.mxu0 %v141
    %143 = vmatprep.subr.mxu0 0.0
    %v144 = vand.u32 %v112, 4294901760
    %145 = vmatpush1.msra.mxu0 %v144
    %146 = vmatprep.subr.mxu0 0.0
    %v147 = vand.u32 %v113, 4294901760
    %148 = vmatpush1.msra.mxu0 %v147
    %149 = vmatprep.subr.mxu0 0.0
    %v150 = vand.u32 %v114, 4294901760
    %151 = vmatpush1.msra.mxu0 %v150
    %152 = vmatprep.subr.mxu0 0.0
    %v153 = vand.u32 %v115, 4294901760
    %154 = vmatpush1.msra.mxu0 %v153
    %155 = vmatprep.subr.mxu0 0.0
    %v156 = vand.u32 %v116, 4294901760
    %157 = vmatpush1.msra.mxu0 %v156
    %158 = vmatprep.subr.mxu0 0.0
    %v159 = vand.u32 %v117, 4294901760
    %160 = vmatpush1.msra.mxu0 %v159
    %161 = vmatprep.subr.mxu0 0.0
    %v162 = vand.u32 %v118, 4294901760
    %163 = vmatpush1.msra.mxu0 %v162
    %164 = vmatprep.subr.mxu0 0.0
    %v165 = vand.u32 %v119, 4294901760
    %166 = vmatpush1.msra.mxu0 %v165
    %167 = vmatprep.subr.mxu0 0.0
    %v168 = vand.u32 %v120, 4294901760
    %169 = vmatpush1.msra.mxu0 %v168
    %170 = vmatprep.subr.mxu0 0.0
    %v171 = vand.u32 %v121, 4294901760
    %172 = vmatpush1.msra.mxu0 %v171
    %173 = vmatprep.subr.mxu0 0.0
    %v174 = vand.u32 %v122, 4294901760
    %175 = vmatpush1.msra.mxu0 %v174
    %176 = vmatprep.subr.mxu0 0.0
    %v177 = vand.u32 %v123, 4294901760
    %178 = vmatpush1.msra.mxu0 %v177
    %179 = vmatprep.subr.mxu0 0.0
    %180 = vmatpush1.msra.mxu0 0.0
    %181 = vmatprep.subr.mxu0 0.0
    %182 = vmatpush1.msra.mxu0 0.0
    %183 = vmatprep.subr.mxu0 0.0
    %184 = vmatpush1.msra.mxu0 0.0
    %185 = vmatprep.subr.mxu0 0.0
    %186 = vmatpush1.msra.mxu0 0.0
    %187 = vmatprep.subr.mxu0 0.0
    %188 = vmatpush1.msra.mxu0 0.0
    %189 = vmatprep.subr.mxu0 0.0
    %190 = vmatpush1.msra.mxu0 0.0
    %191 = vmatprep.subr.mxu0 0.0
    %192 = vmatpush1.msra.mxu0 0.0
    %193 = vmatprep.subr.mxu0 0.0
    %194 = vmatpush1.msra.mxu0 0.0
    %195 = vmatprep.subr.mxu0 0.0
    %196 = vmatpush1.msra.mxu0 0.0
    %197 = vmatprep.subr.mxu0 0.0
    %198 = vmatpush1.msra.mxu0 0.0
    %199 = vmatprep.subr.mxu0 0.0
    %200 = vmatpush1.msra.mxu0 0.0
    %201 = vmatprep.subr.mxu0 0.0
    %202 = vmatpush1.msra.mxu0 0.0
    %203 = vmatprep.subr.mxu0 0.0
    %204 = vmatpush1.msra.mxu0 0.0
    %205 = vmatprep.subr.mxu0 0.0
    %206 = vmatpush1.msra.mxu0 0.0
    %207 = vmatprep.subr.mxu0 0.0
    %208 = vmatpush1.msra.mxu0 0.0
    %209 = vmatprep.subr.mxu0 0.0
    %210 = vmatpush1.msra.mxu0 0.0
    %211 = vmatprep.mubr.f32.mxu0 0.0
    %v212 = vand.u32 %v107, 4294901760
    %v213 = vsub.f32 %v107, %v212
    %v214 = vand.u32 %v213, 4294901760
    %v215 = vsub.f32 %v213, %v214
    %v216 = vand.u32 %v215, 4294901760
    %217 = vmatmul.mubr.f32.gmra.mrb[0].mxu0 %v216
    %v218 = vpop.f32.mrb[0].mxu0
    %v219 = vadd.f32 %v129, %v218
    %v220 = vpop.f32.mrb[0].mxu0
    %221 = vdwg.mxu0
    %222 = vmatprep.subr.mxu0 0.0
    %v223 = vand.u32 %v108, 4294901760
    %v224 = vsub.f32 %v108, %v223
    %v225 = vand.u32 %v224, 4294901760
    %v226 = vsub.f32 %v224, %v225
    %v227 = vand.u32 %v226, 4294901760
    %228 = vmatpush1.msra.mxu0 %v227
    %229 = vmatprep.subr.mxu0 0.0
    %v230 = vand.u32 %v109, 4294901760
    %v231 = vsub.f32 %v109, %v230
    %v232 = vand.u32 %v231, 4294901760
    %v233 = vsub.f32 %v231, %v232
    %v234 = vand.u32 %v233, 4294901760
    %235 = vmatpush1.msra.mxu0 %v234
    %236 = vmatprep.subr.mxu0 0.0
    %v237 = vand.u32 %v110, 4294901760
    %v238 = vsub.f32 %v110, %v237
    %v239 = vand.u32 %v238, 4294901760
    %v240 = vsub.f32 %v238, %v239
    %v241 = vand.u32 %v240, 4294901760
    %242 = vmatpush1.msra.mxu0 %v241
    %243 = vmatprep.subr.mxu0 0.0
    %v244 = vand.u32 %v111, 4294901760
    %v245 = vsub.f32 %v111, %v244
    %v246 = vand.u32 %v245, 4294901760
    %v247 = vsub.f32 %v245, %v246
    %v248 = vand.u32 %v247, 4294901760
    %249 = vmatpush1.msra.mxu0 %v248
    %250 = vmatprep.subr.mxu0 0.0
    %v251 = vand.u32 %v112, 4294901760
    %v252 = vsub.f32 %v112, %v251
    %v253 = vand.u32 %v252, 4294901760
    %v254 = vsub.f32 %v252, %v253
    %v255 = vand.u32 %v254, 4294901760
    %256 = vmatpush1.msra.mxu0 %v255
    %257 = vmatprep.subr.mxu0 0.0
    %v258 = vand.u32 %v113, 4294901760
    %v259 = vsub.f32 %v113, %v258
    %v260 = vand.u32 %v259, 4294901760
    %v261 = vsub.f32 %v259, %v260
    %v262 = vand.u32 %v261, 4294901760
    %263 = vmatpush1.msra.mxu0 %v262
    %264 = vmatprep.subr.mxu0 0.0
    %v265 = vand.u32 %v114, 4294901760
    %v266 = vsub.f32 %v114, %v265
    %v267 = vand.u32 %v266, 4294901760
    %v268 = vsub.f32 %v266, %v267
    %v269 = vand.u32 %v268, 4294901760
    %270 = vmatpush1.msra.mxu0 %v269
    %271 = vmatprep.subr.mxu0 0.0
    %v272 = vand.u32 %v115, 4294901760
    %v273 = vsub.f32 %v115, %v272
    %v274 = vand.u32 %v273, 4294901760
    %v275 = vsub.f32 %v273, %v274
    %v276 = vand.u32 %v275, 4294901760
    %277 = vmatpush1.msra.mxu0 %v276
    %278 = vmatprep.subr.mxu0 0.0
    %v279 = vand.u32 %v116, 4294901760
    %v280 = vsub.f32 %v116, %v279
    %v281 = vand.u32 %v280, 4294901760
    %v282 = vsub.f32 %v280, %v281
    %v283 = vand.u32 %v282, 4294901760
    %284 = vmatpush1.msra.mxu0 %v283
    %285 = vmatprep.subr.mxu0 0.0
    %v286 = vand.u32 %v117, 4294901760
    %v287 = vsub.f32 %v117, %v286
    %v288 = vand.u32 %v287, 4294901760
    %v289 = vsub.f32 %v287, %v288
    %v290 = vand.u32 %v289, 4294901760
    %291 = vmatpush1.msra.mxu0 %v290
    %292 = vmatprep.subr.mxu0 0.0
    %v293 = vand.u32 %v118, 4294901760
    %v294 = vsub.f32 %v118, %v293
    %v295 = vand.u32 %v294, 4294901760
    %v296 = vsub.f32 %v294, %v295
    %v297 = vand.u32 %v296, 4294901760
    %298 = vmatpush1.msra.mxu0 %v297
    %299 = vmatprep.subr.mxu0 0.0
    %v300 = vand.u32 %v119, 4294901760
    %v301 = vsub.f32 %v119, %v300
    %v302 = vand.u32 %v301, 4294901760
    %v303 = vsub.f32 %v301, %v302
    %v304 = vand.u32 %v303, 4294901760
    %305 = vmatpush1.msra.mxu0 %v304
    %306 = vmatprep.subr.mxu0 0.0
    %v307 = vand.u32 %v120, 4294901760
    %v308 = vsub.f32 %v120, %v307
    %v309 = vand.u32 %v308, 4294901760
    %v310 = vsub.f32 %v308, %v309
    %v311 = vand.u32 %v310, 4294901760
    %312 = vmatpush1.msra.mxu0 %v311
    %313 = vmatprep.subr.mxu0 0.0
    %v314 = vand.u32 %v121, 4294901760
    %v315 = vsub.f32 %v121, %v314
    %v316 = vand.u32 %v315, 4294901760
    %v317 = vsub.f32 %v315, %v316
    %v318 = vand.u32 %v317, 4294901760
    %319 = vmatpush1.msra.mxu0 %v318
    %320 = vmatprep.subr.mxu0 0.0
    %v321 = vand.u32 %v122, 4294901760
    %v322 = vsub.f32 %v122, %v321
    %v323 = vand.u32 %v322, 4294901760
    %v324 = vsub.f32 %v322, %v323
    %v325 = vand.u32 %v324, 4294901760
    %326 = vmatpush1.msra.mxu0 %v325
    %327 = vmatprep.subr.mxu0 0.0
    %v328 = vand.u32 %v123, 4294901760
    %v329 = vsub.f32 %v123, %v328
    %v330 = vand.u32 %v329, 4294901760
    %v331 = vsub.f32 %v329, %v330
    %v332 = vand.u32 %v331, 4294901760
    %333 = vmatpush1.msra.mxu0 %v332
    %334 = vmatprep.subr.mxu0 0.0
    %335 = vmatpush1.msra.mxu0 0.0
    %336 = vmatprep.subr.mxu0 0.0
    %337 = vmatpush1.msra.mxu0 0.0
    %338 = vmatprep.subr.mxu0 0.0
    %339 = vmatpush1.msra.mxu0 0.0
    %340 = vmatprep.subr.mxu0 0.0
    %341 = vmatpush1.msra.mxu0 0.0
    %342 = vmatprep.subr.mxu0 0.0
    %343 = vmatpush1.msra.mxu0 0.0
    %344 = vmatprep.subr.mxu0 0.0
    %345 = vmatpush1.msra.mxu0 0.0
    %346 = vmatprep.subr.mxu0 0.0
    %347 = vmatpush1.msra.mxu0 0.0
    %348 = vmatprep.subr.mxu0 0.0
    %349 = vmatpush1.msra.mxu0 0.0
    %350 = vmatprep.subr.mxu0 0.0
    %351 = vmatpush1.msra.mxu0 0.0
    %352 = vmatprep.subr.mxu0 0.0
    %353 = vmatpush1.msra.mxu0 0.0
    %354 = vmatprep.subr.mxu0 0.0
    %355 = vmatpush1.msra.mxu0 0.0
    %356 = vmatprep.subr.mxu0 0.0
    %357 = vmatpush1.msra.mxu0 0.0
    %358 = vmatprep.subr.mxu0 0.0
    %359 = vmatpush1.msra.mxu0 0.0
    %360 = vmatprep.subr.mxu0 0.0
    %361 = vmatpush1.msra.mxu0 0.0
    %362 = vmatprep.subr.mxu0 0.0
    %363 = vmatpush1.msra.mxu0 0.0
    %364 = vmatprep.subr.mxu0 0.0
    %365 = vmatpush1.msra.mxu0 0.0
    %366 = vmatprep.mubr.f32.mxu0 0.0
    %v367 = vand.u32 %v107, 4294901760
    %368 = vmatmul.mubr.f32.gmra.mrb[0].mxu0 %v367
    %v369 = vpop.f32.mrb[0].mxu0
    %v370 = vadd.f32 %v219, %v369
    %v371 = vpop.f32.mrb[0].mxu0
    %372 = vdwg.mxu0
    %373 = vmatprep.subr.mxu0 0.0
    %v374 = vand.u32 %v108, 4294901760
    %v375 = vsub.f32 %v108, %v374
    %376 = vmatpush1.msra.mxu0 %v375
    %377 = vmatprep.subr.mxu0 0.0
    %v378 = vand.u32 %v109, 4294901760
    %v379 = vsub.f32 %v109, %v378
    %380 = vmatpush1.msra.mxu0 %v379
    %381 = vmatprep.subr.mxu0 0.0
    %v382 = vand.u32 %v110, 4294901760
    %v383 = vsub.f32 %v110, %v382
    %384 = vmatpush1.msra.mxu0 %v383
    %385 = vmatprep.subr.mxu0 0.0
    %v386 = vand.u32 %v111, 4294901760
    %v387 = vsub.f32 %v111, %v386
    %388 = vmatpush1.msra.mxu0 %v387
    %389 = vmatprep.subr.mxu0 0.0
    %v390 = vand.u32 %v112, 4294901760
    %v391 = vsub.f32 %v112, %v390
    %392 = vmatpush1.msra.mxu0 %v391
    %393 = vmatprep.subr.mxu0 0.0
    %v394 = vand.u32 %v113, 4294901760
    %v395 = vsub.f32 %v113, %v394
    %396 = vmatpush1.msra.mxu0 %v395
    %397 = vmatprep.subr.mxu0 0.0
    %v398 = vand.u32 %v114, 4294901760
    %v399 = vsub.f32 %v114, %v398
    %400 = vmatpush1.msra.mxu0 %v399
    %401 = vmatprep.subr.mxu0 0.0
    %v402 = vand.u32 %v115, 4294901760
    %v403 = vsub.f32 %v115, %v402
    %404 = vmatpush1.msra.mxu0 %v403
    %405 = vmatprep.subr.mxu0 0.0
    %v406 = vand.u32 %v116, 4294901760
    %v407 = vsub.f32 %v116, %v406
    %408 = vmatpush1.msra.mxu0 %v407
    %409 = vmatprep.subr.mxu0 0.0
    %v410 = vand.u32 %v117, 4294901760
    %v411 = vsub.f32 %v117, %v410
    %412 = vmatpush1.msra.mxu0 %v411
    %413 = vmatprep.subr.mxu0 0.0
    %v414 = vand.u32 %v118, 4294901760
    %v415 = vsub.f32 %v118, %v414
    %416 = vmatpush1.msra.mxu0 %v415
    %417 = vmatprep.subr.mxu0 0.0
    %v418 = vand.u32 %v119, 4294901760
    %v419 = vsub.f32 %v119, %v418
    %420 = vmatpush1.msra.mxu0 %v419
    %421 = vmatprep.subr.mxu0 0.0
    %v422 = vand.u32 %v120, 4294901760
    %v423 = vsub.f32 %v120, %v422
    %424 = vmatpush1.msra.mxu0 %v423
    %425 = vmatprep.subr.mxu0 0.0
    %v426 = vand.u32 %v121, 4294901760
    %v427 = vsub.f32 %v121, %v426
    %428 = vmatpush1.msra.mxu0 %v427
    %429 = vmatprep.subr.mxu0 0.0
    %v430 = vand.u32 %v122, 4294901760
    %v431 = vsub.f32 %v122, %v430
    %432 = vmatpush1.msra.mxu0 %v431
    %433 = vmatprep.subr.mxu0 0.0
    %v434 = vand.u32 %v123, 4294901760
    %v435 = vsub.f32 %v123, %v434
    %436 = vmatpush1.msra.mxu0 %v435
    %437 = vmatprep.subr.mxu0 0.0
    %438 = vmatpush1.msra.mxu0 0.0
    %439 = vmatprep.subr.mxu0 0.0
    %440 = vmatpush1.msra.mxu0 0.0
    %441 = vmatprep.subr.mxu0 0.0
    %442 = vmatpush1.msra.mxu0 0.0
    %443 = vmatprep.subr.mxu0 0.0
    %444 = vmatpush1.msra.mxu0 0.0
    %445 = vmatprep.subr.mxu0 0.0
    %446 = vmatpush1.msra.mxu0 0.0
    %447 = vmatprep.subr.mxu0 0.0
    %448 = vmatpush1.msra.mxu0 0.0
    %449 = vmatprep.subr.mxu0 0.0
    %450 = vmatpush1.msra.mxu0 0.0
    %451 = vmatprep.subr.mxu0 0.0
    %452 = vmatpush1.msra.mxu0 0.0
    %453 = vmatprep.subr.mxu0 0.0
    %454 = vmatpush1.msra.mxu0 0.0
    %455 = vmatprep.subr.mxu0 0.0
    %456 = vmatpush1.msra.mxu0 0.0
    %457 = vmatprep.subr.mxu0 0.0
    %458 = vmatpush1.msra.mxu0 0.0
    %459 = vmatprep.subr.mxu0 0.0
    %460 = vmatpush1.msra.mxu0 0.0
    %461 = vmatprep.subr.mxu0 0.0
    %462 = vmatpush1.msra.mxu0 0.0
    %463 = vmatprep.subr.mxu0 0.0
    %464 = vmatpush1.msra.mxu0 0.0
    %465 = vmatprep.subr.mxu0 0.0
    %466 = vmatpush1.msra.mxu0 0.0
    %467 = vmatprep.subr.mxu0 0.0
    %468 = vmatpush1.msra.mxu0 0.0
    %469 = vmatprep.mubr.f32.mxu0 0.0
    %v470 = vand.u32 %v107, 4294901760
    %v471 = vsub.f32 %v107, %v470
    %472 = vmatmul.mubr.f32.gmra.mrb[0].mxu0 %v471
    %v473 = vpop.f32.mrb[0].mxu0
    %v474 = vadd.f32 %v370, %v473
    %v475 = vpop.f32.mrb[0].mxu0
    %476 = vdwg.mxu0
    %477 = vmatprep.subr.mxu0 0.0
    %v478 = vand.u32 %v108, 4294901760
    %479 = vmatpush1.msra.mxu0 %v478
    %480 = vmatprep.subr.mxu0 0.0
    %v481 = vand.u32 %v109, 4294901760
    %482 = vmatpush1.msra.mxu0 %v481
    %483 = vmatprep.subr.mxu0 0.0
    %v484 = vand.u32 %v110, 4294901760
    %485 = vmatpush1.msra.mxu0 %v484
    %486 = vmatprep.subr.mxu0 0.0
    %v487 = vand.u32 %v111, 4294901760
    %488 = vmatpush1.msra.mxu0 %v487
    %489 = vmatprep.subr.mxu0 0.0
    %v490 = vand.u32 %v112, 4294901760
    %491 = vmatpush1.msra.mxu0 %v490
    %492 = vmatprep.subr.mxu0 0.0
    %v493 = vand.u32 %v113, 4294901760
    %494 = vmatpush1.msra.mxu0 %v493
    %495 = vmatprep.subr.mxu0 0.0
    %v496 = vand.u32 %v114, 4294901760
    %497 = vmatpush1.msra.mxu0 %v496
    %498 = vmatprep.subr.mxu0 0.0
    %v499 = vand.u32 %v115, 4294901760
    %500 = vmatpush1.msra.mxu0 %v499
    %501 = vmatprep.subr.mxu0 0.0
    %v502 = vand.u32 %v116, 4294901760
    %503 = vmatpush1.msra.mxu0 %v502
    %504 = vmatprep.subr.mxu0 0.0
    %v505 = vand.u32 %v117, 4294901760
    %506 = vmatpush1.msra.mxu0 %v505
    %507 = vmatprep.subr.mxu0 0.0
    %v508 = vand.u32 %v118, 4294901760
    %509 = vmatpush1.msra.mxu0 %v508
    %510 = vmatprep.subr.mxu0 0.0
    %v511 = vand.u32 %v119, 4294901760
    %512 = vmatpush1.msra.mxu0 %v511
    %513 = vmatprep.subr.mxu0 0.0
    %v514 = vand.u32 %v120, 4294901760
    %515 = vmatpush1.msra.mxu0 %v514
    %516 = vmatprep.subr.mxu0 0.0
    %v517 = vand.u32 %v121, 4294901760
    %518 = vmatpush1.msra.mxu0 %v517
    %519 = vmatprep.subr.mxu0 0.0
    %v520 = vand.u32 %v122, 4294901760
    %521 = vmatpush1.msra.mxu0 %v520
    %522 = vmatprep.subr.mxu0 0.0
    %v523 = vand.u32 %v123, 4294901760
    %524 = vmatpush1.msra.mxu0 %v523
    %525 = vmatprep.subr.mxu0 0.0
    %526 = vmatpush1.msra.mxu0 0.0
    %527 = vmatprep.subr.mxu0 0.0
    %528 = vmatpush1.msra.mxu0 0.0
    %529 = vmatprep.subr.mxu0 0.0
    %530 = vmatpush1.msra.mxu0 0.0
    %531 = vmatprep.subr.mxu0 0.0
    %532 = vmatpush1.msra.mxu0 0.0
    %533 = vmatprep.subr.mxu0 0.0
    %534 = vmatpush1.msra.mxu0 0.0
    %535 = vmatprep.subr.mxu0 0.0
    %536 = vmatpush1.msra.mxu0 0.0
    %537 = vmatprep.subr.mxu0 0.0
    %538 = vmatpush1.msra.mxu0 0.0
    %539 = vmatprep.subr.mxu0 0.0
    %540 = vmatpush1.msra.mxu0 0.0
    %541 = vmatprep.subr.mxu0 0.0
    %542 = vmatpush1.msra.mxu0 0.0
    %543 = vmatprep.subr.mxu0 0.0
    %544 = vmatpush1.msra.mxu0 0.0
    %545 = vmatprep.subr.mxu0 0.0
    %546 = vmatpush1.msra.mxu0 0.0
    %547 = vmatprep.subr.mxu0 0.0
    %548 = vmatpush1.msra.mxu0 0.0
    %549 = vmatprep.subr.mxu0 0.0
    %550 = vmatpush1.msra.mxu0 0.0
    %551 = vmatprep.subr.mxu0 0.0
    %552 = vmatpush1.msra.mxu0 0.0
    %553 = vmatprep.subr.mxu0 0.0
    %554 = vmatpush1.msra.mxu0 0.0
    %555 = vmatprep.subr.mxu0 0.0
    %556 = vmatpush1.msra.mxu0 0.0
    %557 = vmatprep.mubr.f32.mxu0 0.0
    %v558 = vand.u32 %v107, 4294901760
    %v559 = vsub.f32 %v107, %v558
    %v560 = vand.u32 %v559, 4294901760
    %561 = vmatmul.mubr.f32.gmra.mrb[0].mxu0 %v560
    %v562 = vpop.f32.mrb[0].mxu0
    %v563 = vadd.f32 %v474, %v562
    %v564 = vpop.f32.mrb[0].mxu0
    %565 = vdwg.mxu0
    %566 = vmatprep.subr.mxu0 0.0
    %v567 = vand.u32 %v108, 4294901760
    %v568 = vsub.f32 %v108, %v567
    %v569 = vand.u32 %v568, 4294901760
    %570 = vmatpush1.msra.mxu0 %v569
    %571 = vmatprep.subr.mxu0 0.0
    %v572 = vand.u32 %v109, 4294901760
    %v573 = vsub.f32 %v109, %v572
    %v574 = vand.u32 %v573, 4294901760
    %575 = vmatpush1.msra.mxu0 %v574
    %576 = vmatprep.subr.mxu0 0.0
    %v577 = vand.u32 %v110, 4294901760
    %v578 = vsub.f32 %v110, %v577
    %v579 = vand.u32 %v578, 4294901760
    %580 = vmatpush1.msra.mxu0 %v579
    %581 = vmatprep.subr.mxu0 0.0
    %v582 = vand.u32 %v111, 4294901760
    %v583 = vsub.f32 %v111, %v582
    %v584 = vand.u32 %v583, 4294901760
    %585 = vmatpush1.msra.mxu0 %v584
    %586 = vmatprep.subr.mxu0 0.0
    %v587 = vand.u32 %v112, 4294901760
    %v588 = vsub.f32 %v112, %v587
    %v589 = vand.u32 %v588, 4294901760
    %590 = vmatpush1.msra.mxu0 %v589
    %591 = vmatprep.subr.mxu0 0.0
    %v592 = vand.u32 %v113, 4294901760
    %v593 = vsub.f32 %v113, %v592
    %v594 = vand.u32 %v593, 4294901760
    %595 = vmatpush1.msra.mxu0 %v594
    %596 = vmatprep.subr.mxu0 0.0
    %v597 = vand.u32 %v114, 4294901760
    %v598 = vsub.f32 %v114, %v597
    %v599 = vand.u32 %v598, 4294901760
    %600 = vmatpush1.msra.mxu0 %v599
    %601 = vmatprep.subr.mxu0 0.0
    %v602 = vand.u32 %v115, 4294901760
    %v603 = vsub.f32 %v115, %v602
    %v604 = vand.u32 %v603, 4294901760
    %605 = vmatpush1.msra.mxu0 %v604
    %606 = vmatprep.subr.mxu0 0.0
    %v607 = vand.u32 %v116, 4294901760
    %v608 = vsub.f32 %v116, %v607
    %v609 = vand.u32 %v608, 4294901760
    %610 = vmatpush1.msra.mxu0 %v609
    %611 = vmatprep.subr.mxu0 0.0
    %v612 = vand.u32 %v117, 4294901760
    %v613 = vsub.f32 %v117, %v612
    %v614 = vand.u32 %v613, 4294901760
    %615 = vmatpush1.msra.mxu0 %v614
    %616 = vmatprep.subr.mxu0 0.0
    %v617 = vand.u32 %v118, 4294901760
    %v618 = vsub.f32 %v118, %v617
    %v619 = vand.u32 %v618, 4294901760
    %620 = vmatpush1.msra.mxu0 %v619
    %621 = vmatprep.subr.mxu0 0.0
    %v622 = vand.u32 %v119, 4294901760
    %v623 = vsub.f32 %v119, %v622
    %v624 = vand.u32 %v623, 4294901760
    %625 = vmatpush1.msra.mxu0 %v624
    %626 = vmatprep.subr.mxu0 0.0
    %v627 = vand.u32 %v120, 4294901760
    %v628 = vsub.f32 %v120, %v627
    %v629 = vand.u32 %v628, 4294901760
    %630 = vmatpush1.msra.mxu0 %v629
    %631 = vmatprep.subr.mxu0 0.0
    %v632 = vand.u32 %v121, 4294901760
    %v633 = vsub.f32 %v121, %v632
    %v634 = vand.u32 %v633, 4294901760
    %635 = vmatpush1.msra.mxu0 %v634
    %636 = vmatprep.subr.mxu0 0.0
    %v637 = vand.u32 %v122, 4294901760
    %v638 = vsub.f32 %v122, %v637
    %v639 = vand.u32 %v638, 4294901760
    %640 = vmatpush1.msra.mxu0 %v639
    %641 = vmatprep.subr.mxu0 0.0
    %v642 = vand.u32 %v123, 4294901760
    %v643 = vsub.f32 %v123, %v642
    %v644 = vand.u32 %v643, 4294901760
    %645 = vmatpush1.msra.mxu0 %v644
    %646 = vmatprep.subr.mxu0 0.0
    %647 = vmatpush1.msra.mxu0 0.0
    %648 = vmatprep.subr.mxu0 0.0
    %649 = vmatpush1.msra.mxu0 0.0
    %650 = vmatprep.subr.mxu0 0.0
    %651 = vmatpush1.msra.mxu0 0.0
    %652 = vmatprep.subr.mxu0 0.0
    %653 = vmatpush1.msra.mxu0 0.0
    %654 = vmatprep.subr.mxu0 0.0
    %655 = vmatpush1.msra.mxu0 0.0
    %656 = vmatprep.subr.mxu0 0.0
    %657 = vmatpush1.msra.mxu0 0.0
    %658 = vmatprep.subr.mxu0 0.0
    %659 = vmatpush1.msra.mxu0 0.0
    %660 = vmatprep.subr.mxu0 0.0
    %661 = vmatpush1.msra.mxu0 0.0
    %662 = vmatprep.subr.mxu0 0.0
    %663 = vmatpush1.msra.mxu0 0.0
    %664 = vmatprep.subr.mxu0 0.0
    %665 = vmatpush1.msra.mxu0 0.0
    %666 = vmatprep.subr.mxu0 0.0
    %667 = vmatpush1.msra.mxu0 0.0
    %668 = vmatprep.subr.mxu0 0.0
    %669 = vmatpush1.msra.mxu0 0.0
    %670 = vmatprep.subr.mxu0 0.0
    %671 = vmatpush1.msra.mxu0 0.0
    %672 = vmatprep.subr.mxu0 0.0
    %673 = vmatpush1.msra.mxu0 0.0
    %674 = vmatprep.subr.mxu0 0.0
    %675 = vmatpush1.msra.mxu0 0.0
    %676 = vmatprep.subr.mxu0 0.0
    %677 = vmatpush1.msra.mxu0 0.0
    %678 = vmatprep.mubr.f32.mxu0 0.0
    %v679 = vand.u32 %v107, 4294901760
    %680 = vmatmul.mubr.f32.gmra.mrb[0].mxu0 %v679
    %v681 = vpop.f32.mrb[0].mxu0
    %v682 = vadd.f32 %v563, %v681
    %v683 = vpop.f32.mrb[0].mxu0
    %684 = vdwg.mxu0
    %685 = vmatprep.subr.mxu0 0.0
    %v686 = vand.u32 %v108, 4294901760
    %687 = vmatpush1.msra.mxu0 %v686
    %688 = vmatprep.subr.mxu0 0.0
    %v689 = vand.u32 %v109, 4294901760
    %690 = vmatpush1.msra.mxu0 %v689
    %691 = vmatprep.subr.mxu0 0.0
    %v692 = vand.u32 %v110, 4294901760
    %693 = vmatpush1.msra.mxu0 %v692
    %694 = vmatprep.subr.mxu0 0.0
    %v695 = vand.u32 %v111, 4294901760
    %696 = vmatpush1.msra.mxu0 %v695
    %697 = vmatprep.subr.mxu0 0.0
    %v698 = vand.u32 %v112, 4294901760
    %699 = vmatpush1.msra.mxu0 %v698
    %700 = vmatprep.subr.mxu0 0.0
    %v701 = vand.u32 %v113, 4294901760
    %702 = vmatpush1.msra.mxu0 %v701
    %703 = vmatprep.subr.mxu0 0.0
    %v704 = vand.u32 %v114, 4294901760
    %705 = vmatpush1.msra.mxu0 %v704
    %706 = vmatprep.subr.mxu0 0.0
    %v707 = vand.u32 %v115, 4294901760
    %708 = vmatpush1.msra.mxu0 %v707
    %709 = vmatprep.subr.mxu0 0.0
    %v710 = vand.u32 %v116, 4294901760
    %711 = vmatpush1.msra.mxu0 %v710
    %712 = vmatprep.subr.mxu0 0.0
    %v713 = vand.u32 %v117, 4294901760
    %714 = vmatpush1.msra.mxu0 %v713
    %715 = vmatprep.subr.mxu0 0.0
    %v716 = vand.u32 %v118, 4294901760
    %717 = vmatpush1.msra.mxu0 %v716
    %718 = vmatprep.subr.mxu0 0.0
    %v719 = vand.u32 %v119, 4294901760
    %720 = vmatpush1.msra.mxu0 %v719
    %721 = vmatprep.subr.mxu0 0.0
    %v722 = vand.u32 %v120, 4294901760
    %723 = vmatpush1.msra.mxu0 %v722
    %724 = vmatprep.subr.mxu0 0.0
    %v725 = vand.u32 %v121, 4294901760
    %726 = vmatpush1.msra.mxu0 %v725
    %727 = vmatprep.subr.mxu0 0.0
    %v728 = vand.u32 %v122, 4294901760
    %729 = vmatpush1.msra.mxu0 %v728
    %730 = vmatprep.subr.mxu0 0.0
    %v731 = vand.u32 %v123, 4294901760
    %732 = vmatpush1.msra.mxu0 %v731
    %733 = vmatprep.subr.mxu0 0.0
    %734 = vmatpush1.msra.mxu0 0.0
    %735 = vmatprep.subr.mxu0 0.0
    %736 = vmatpush1.msra.mxu0 0.0
    %737 = vmatprep.subr.mxu0 0.0
    %738 = vmatpush1.msra.mxu0 0.0
    %739 = vmatprep.subr.mxu0 0.0
    %740 = vmatpush1.msra.mxu0 0.0
    %741 = vmatprep.subr.mxu0 0.0
    %742 = vmatpush1.msra.mxu0 0.0
    %743 = vmatprep.subr.mxu0 0.0
    %744 = vmatpush1.msra.mxu0 0.0
    %745 = vmatprep.subr.mxu0 0.0
    %746 = vmatpush1.msra.mxu0 0.0
    %747 = vmatprep.subr.mxu0 0.0
    %748 = vmatpush1.msra.mxu0 0.0
    %749 = vmatprep.subr.mxu0 0.0
    %750 = vmatpush1.msra.mxu0 0.0
    %751 = vmatprep.subr.mxu0 0.0
    %752 = vmatpush1.msra.mxu0 0.0
    %753 = vmatprep.subr.mxu0 0.0
    %754 = vmatpush1.msra.mxu0 0.0
    %755 = vmatprep.subr.mxu0 0.0
    %756 = vmatpush1.msra.mxu0 0.0
    %757 = vmatprep.subr.mxu0 0.0
    %758 = vmatpush1.msra.mxu0 0.0
    %759 = vmatprep.subr.mxu0 0.0
    %760 = vmatpush1.msra.mxu0 0.0
    %761 = vmatprep.subr.mxu0 0.0
    %762 = vmatpush1.msra.mxu0 0.0
    %763 = vmatprep.subr.mxu0 0.0
    %764 = vmatpush1.msra.mxu0 0.0
    %765 = vmatprep.mubr.f32.mxu0 0.0
    %v766 = vand.u32 %v107, 4294901760
    %767 = vmatmul.mubr.f32.gmra.mrb[0].mxu0 %v766
    %v768 = vpop.f32.mrb[0].mxu0
    %v769 = vadd.f32 %v682, %v768
    %v770 = vpop.f32.mrb[0].mxu0
    %771 = vdwg.mxu0
    %v772 = vmax.f32 %v769, 0.0
    %v773 = vld [vmem:[#allocation5] sm:$0xff]
    %v774 = vld [vmem:[#allocation5 + $0x8] sm:$0xff]
    %v775 = vld [vmem:[#allocation5 + $0x10] sm:$0xff]
    %v776 = vld [vmem:[#allocation5 + $0x18] sm:$0xff]
    %v777 = vld [vmem:[#allocation5 + $0x20] sm:$0xff]
    %v778 = vld [vmem:[#allocation5 + $0x28] sm:$0xff]
    %v779 = vld [vmem:[#allocation5 + $0x30] sm:$0xff]
    %v780 = vld [vmem:[#allocation5 + $0x38] sm:$0xff]
    %v781 = vld [vmem:[#allocation5 + $0x40] sm:$0xff]
    %v782 = vld [vmem:[#allocation5 + $0x48] sm:$0xff]
    %v783 = vld [vmem:[#allocation5 + $0x50] sm:$0xff]
    %v784 = vld [vmem:[#allocation5 + $0x58] sm:$0xff]
    %v785 = vld [vmem:[#allocation5 + $0x60] sm:$0xff]
    %v786 = vld [vmem:[#allocation5 + $0x68] sm:$0xff]
    %v787 = vld [vmem:[#allocation5 + $0x70] sm:$0xff]
    %v788 = vld [vmem:[#allocation5 + $0x78] sm:$0xff]
    %v789 = vld [vmem:[%s6] sm:$0x1]
    %v791 = vlaneseq
    %v792 = vshrl.u32 %v791, 7
    %v793 = vsub.s32 0, %v792
    %v794 = vrot.slane %v789, %v793
    %796 = vmatprep.subr.mxu0 0.0
    %v797 = vand.u32 %v773, 4294901760
    %798 = vmatpush1.msra.mxu0 %v797
    %799 = vmatprep.subr.mxu0 0.0
    %v800 = vand.u32 %v774, 4294901760
    %801 = vmatpush1.msra.mxu0 %v800
    %802 = vmatprep.subr.mxu0 0.0
    %v803 = vand.u32 %v775, 4294901760
    %804 = vmatpush1.msra.mxu0 %v803
    %805 = vmatprep.subr.mxu0 0.0
    %v806 = vand.u32 %v776, 4294901760
    %807 = vmatpush1.msra.mxu0 %v806
    %808 = vmatprep.subr.mxu0 0.0
    %v809 = vand.u32 %v777, 4294901760
    %810 = vmatpush1.msra.mxu0 %v809
    %811 = vmatprep.subr.mxu0 0.0
    %v812 = vand.u32 %v778, 4294901760
    %813 = vmatpush1.msra.mxu0 %v812
    %814 = vmatprep.subr.mxu0 0.0
    %v815 = vand.u32 %v779, 4294901760
    %816 = vmatpush1.msra.mxu0 %v815
    %817 = vmatprep.subr.mxu0 0.0
    %v818 = vand.u32 %v780, 4294901760
    %819 = vmatpush1.msra.mxu0 %v818
    %820 = vmatprep.subr.mxu0 0.0
    %v821 = vand.u32 %v781, 4294901760
    %822 = vmatpush1.msra.mxu0 %v821
    %823 = vmatprep.subr.mxu0 0.0
    %v824 = vand.u32 %v782, 4294901760
    %825 = vmatpush1.msra.mxu0 %v824
    %826 = vmatprep.subr.mxu0 0.0
    %v827 = vand.u32 %v783, 4294901760
    %828 = vmatpush1.msra.mxu0 %v827
    %829 = vmatprep.subr.mxu0 0.0
    %v830 = vand.u32 %v784, 4294901760
    %831 = vmatpush1.msra.mxu0 %v830
    %832 = vmatprep.subr.mxu0 0.0
    %v833 = vand.u32 %v785, 4294901760
    %834 = vmatpush1.msra.mxu0 %v833
    %835 = vmatprep.subr.mxu0 0.0
    %v836 = vand.u32 %v786, 4294901760
    %837 = vmatpush1.msra.mxu0 %v836
    %838 = vmatprep.subr.mxu0 0.0
    %v839 = vand.u32 %v787, 4294901760
    %840 = vmatpush1.msra.mxu0 %v839
    %841 = vmatprep.subr.mxu0 0.0
    %v842 = vand.u32 %v788, 4294901760
    %843 = vmatpush1.msra.mxu0 %v842
    %844 = vmatprep.subr.mxu0 0.0
    %845 = vmatpush1.msra.mxu0 0.0
    %846 = vmatprep.subr.mxu0 0.0
    %847 = vmatpush1.msra.mxu0 0.0
    %848 = vmatprep.subr.mxu0 0.0
    %849 = vmatpush1.msra.mxu0 0.0
    %850 = vmatprep.subr.mxu0 0.0
    %851 = vmatpush1.msra.mxu0 0.0
    %852 = vmatprep.subr.mxu0 0.0
    %853 = vmatpush1.msra.mxu0 0.0
    %854 = vmatprep.subr.mxu0 0.0
    %855 = vmatpush1.msra.mxu0 0.0
    %856 = vmatprep.subr.mxu0 0.0
    %857 = vmatpush1.msra.mxu0 0.0
    %858 = vmatprep.subr.mxu0 0.0
    %859 = vmatpush1.msra.mxu0 0.0
    %860 = vmatprep.subr.mxu0 0.0
    %861 = vmatpush1.msra.mxu0 0.0
    %862 = vmatprep.subr.mxu0 0.0
    %863 = vmatpush1.msra.mxu0 0.0
    %864 = vmatprep.subr.mxu0 0.0
    %865 = vmatpush1.msra.mxu0 0.0
    %866 = vmatprep.subr.mxu0 0.0
    %867 = vmatpush1.msra.mxu0 0.0
    %868 = vmatprep.subr.mxu0 0.0
    %869 = vmatpush1.msra.mxu0 0.0
    %870 = vmatprep.subr.mxu0 0.0
    %871 = vmatpush1.msra.mxu0 0.0
    %872 = vmatprep.subr.mxu0 0.0
    %873 = vmatpush1.msra.mxu0 0.0
    %874 = vmatprep.subr.mxu0 0.0
    %875 = vmatpush1.msra.mxu0 0.0
    %876 = vmatprep.mubr.f32.mxu0 0.0
    %v877 = vand.u32 %v772, 4294901760
    %v878 = vsub.f32 %v772, %v877
    %v879 = vand.u32 %v878, 4294901760
    %v880 = vsub.f32 %v878, %v879
    %v881 = vand.u32 %v880, 4294901760
    %882 = vmatmul.mubr.f32.gmra.mrb[0].mxu0 %v881
    %v883 = vpop.f32.mrb[0].mxu0
    %v884 = vadd.f32 %v794, %v883
    %v885 = vpop.f32.mrb[0].mxu0
    %886 = vdwg.mxu0
    %887 = vmatprep.subr.mxu0 0.0
    %v888 = vand.u32 %v773, 4294901760
    %v889 = vsub.f32 %v773, %v888
    %v890 = vand.u32 %v889, 4294901760
    %v891 = vsub.f32 %v889, %v890
    %v892 = vand.u32 %v891, 4294901760
    %893 = vmatpush1.msra.mxu0 %v892
    %894 = vmatprep.subr.mxu0 0.0
    %v895 = vand.u32 %v774, 4294901760
    %v896 = vsub.f32 %v774, %v895
    %v897 = vand.u32 %v896, 4294901760
    %v898 = vsub.f32 %v896, %v897
    %v899 = vand.u32 %v898, 4294901760
    %900 = vmatpush1.msra.mxu0 %v899
    %901 = vmatprep.subr.mxu0 0.0
    %v902 = vand.u32 %v775, 4294901760
    %v903 = vsub.f32 %v775, %v902
    %v904 = vand.u32 %v903, 4294901760
    %v905 = vsub.f32 %v903, %v904
    %v906 = vand.u32 %v905, 4294901760
    %907 = vmatpush1.msra.mxu0 %v906
    %908 = vmatprep.subr.mxu0 0.0
    %v909 = vand.u32 %v776, 4294901760
    %v910 = vsub.f32 %v776, %v909
    %v911 = vand.u32 %v910, 4294901760
    %v912 = vsub.f32 %v910, %v911
    %v913 = vand.u32 %v912, 4294901760
    %914 = vmatpush1.msra.mxu0 %v913
    %915 = vmatprep.subr.mxu0 0.0
    %v916 = vand.u32 %v777, 4294901760
    %v917 = vsub.f32 %v777, %v916
    %v918 = vand.u32 %v917, 4294901760
    %v919 = vsub.f32 %v917, %v918
    %v920 = vand.u32 %v919, 4294901760
    %921 = vmatpush1.msra.mxu0 %v920
    %922 = vmatprep.subr.mxu0 0.0
    %v923 = vand.u32 %v778, 4294901760
    %v924 = vsub.f32 %v778, %v923
    %v925 = vand.u32 %v924, 4294901760
    %v926 = vsub.f32 %v924, %v925
    %v927 = vand.u32 %v926, 4294901760
    %928 = vmatpush1.msra.mxu0 %v927
    %929 = vmatprep.subr.mxu0 0.0
    %v930 = vand.u32 %v779, 4294901760
    %v931 = vsub.f32 %v779, %v930
    %v932 = vand.u32 %v931, 4294901760
    %v933 = vsub.f32 %v931, %v932
    %v934 = vand.u32 %v933, 4294901760
    %935 = vmatpush1.msra.mxu0 %v934
    %936 = vmatprep.subr.mxu0 0.0
    %v937 = vand.u32 %v780, 4294901760
    %v938 = vsub.f32 %v780, %v937
    %v939 = vand.u32 %v938, 4294901760
    %v940 = vsub.f32 %v938, %v939
    %v941 = vand.u32 %v940, 4294901760
    %942 = vmatpush1.msra.mxu0 %v941
    %943 = vmatprep.subr.mxu0 0.0
    %v944 = vand.u32 %v781, 4294901760
    %v945 = vsub.f32 %v781, %v944
    %v946 = vand.u32 %v945, 4294901760
    %v947 = vsub.f32 %v945, %v946
    %v948 = vand.u32 %v947, 4294901760
    %949 = vmatpush1.msra.mxu0 %v948
    %950 = vmatprep.subr.mxu0 0.0
    %v951 = vand.u32 %v782, 4294901760
    %v952 = vsub.f32 %v782, %v951
    %v953 = vand.u32 %v952, 4294901760
    %v954 = vsub.f32 %v952, %v953
    %v955 = vand.u32 %v954, 4294901760
    %956 = vmatpush1.msra.mxu0 %v955
    %957 = vmatprep.subr.mxu0 0.0
    %v958 = vand.u32 %v783, 4294901760
    %v959 = vsub.f32 %v783, %v958
    %v960 = vand.u32 %v959, 4294901760
    %v961 = vsub.f32 %v959, %v960
    %v962 = vand.u32 %v961, 4294901760
    %963 = vmatpush1.msra.mxu0 %v962
    %964 = vmatprep.subr.mxu0 0.0
    %v965 = vand.u32 %v784, 4294901760
    %v966 = vsub.f32 %v784, %v965
    %v967 = vand.u32 %v966, 4294901760
    %v968 = vsub.f32 %v966, %v967
    %v969 = vand.u32 %v968, 4294901760
    %970 = vmatpush1.msra.mxu0 %v969
    %971 = vmatprep.subr.mxu0 0.0
    %v972 = vand.u32 %v785, 4294901760
    %v973 = vsub.f32 %v785, %v972
    %v974 = vand.u32 %v973, 4294901760
    %v975 = vsub.f32 %v973, %v974
    %v976 = vand.u32 %v975, 4294901760
    %977 = vmatpush1.msra.mxu0 %v976
    %978 = vmatprep.subr.mxu0 0.0
    %v979 = vand.u32 %v786, 4294901760
    %v980 = vsub.f32 %v786, %v979
    %v981 = vand.u32 %v980, 4294901760
    %v982 = vsub.f32 %v980, %v981
    %v983 = vand.u32 %v982, 4294901760
    %984 = vmatpush1.msra.mxu0 %v983
    %985 = vmatprep.subr.mxu0 0.0
    %v986 = vand.u32 %v787, 4294901760
    %v987 = vsub.f32 %v787, %v986
    %v988 = vand.u32 %v987, 4294901760
    %v989 = vsub.f32 %v987, %v988
    %v990 = vand.u32 %v989, 4294901760
    %991 = vmatpush1.msra.mxu0 %v990
    %992 = vmatprep.subr.mxu0 0.0
    %v993 = vand.u32 %v788, 4294901760
    %v994 = vsub.f32 %v788, %v993
    %v995 = vand.u32 %v994, 4294901760
    %v996 = vsub.f32 %v994, %v995
    %v997 = vand.u32 %v996, 4294901760
    %998 = vmatpush1.msra.mxu0 %v997
    %999 = vmatprep.subr.mxu0 0.0
    %1000 = vmatpush1.msra.mxu0 0.0
    %1001 = vmatprep.subr.mxu0 0.0
    %1002 = vmatpush1.msra.mxu0 0.0
    %1003 = vmatprep.subr.mxu0 0.0
    %1004 = vmatpush1.msra.mxu0 0.0
    %1005 = vmatprep.subr.mxu0 0.0
    %1006 = vmatpush1.msra.mxu0 0.0
    %1007 = vmatprep.subr.mxu0 0.0
    %1008 = vmatpush1.msra.mxu0 0.0
    %1009 = vmatprep.subr.mxu0 0.0
    %1010 = vmatpush1.msra.mxu0 0.0
    %1011 = vmatprep.subr.mxu0 0.0
    %1012 = vmatpush1.msra.mxu0 0.0
    %1013 = vmatprep.subr.mxu0 0.0
    %1014 = vmatpush1.msra.mxu0 0.0
    %1015 = vmatprep.subr.mxu0 0.0
    %1016 = vmatpush1.msra.mxu0 0.0
    %1017 = vmatprep.subr.mxu0 0.0
    %1018 = vmatpush1.msra.mxu0 0.0
    %1019 = vmatprep.subr.mxu0 0.0
    %1020 = vmatpush1.msra.mxu0 0.0
    %1021 = vmatprep.subr.mxu0 0.0
    %1022 = vmatpush1.msra.mxu0 0.0
    %1023 = vmatprep.subr.mxu0 0.0
    %1024 = vmatpush1.msra.mxu0 0.0
    %1025 = vmatprep.subr.mxu0 0.0
    %1026 = vmatpush1.msra.mxu0 0.0
    %1027 = vmatprep.subr.mxu0 0.0
    %1028 = vmatpush1.msra.mxu0 0.0
    %1029 = vmatprep.subr.mxu0 0.0
    %1030 = vmatpush1.msra.mxu0 0.0
    %1031 = vmatprep.mubr.f32.mxu0 0.0
    %v1032 = vand.u32 %v772, 4294901760
    %1033 = vmatmul.mubr.f32.gmra.mrb[0].mxu0 %v1032
    %v1034 = vpop.f32.mrb[0].mxu0
    %v1035 = vadd.f32 %v884, %v1034
    %v1036 = vpop.f32.mrb[0].mxu0
    %1037 = vdwg.mxu0
    %1038 = vmatprep.subr.mxu0 0.0
    %v1039 = vand.u32 %v773, 4294901760
    %v1040 = vsub.f32 %v773, %v1039
    %1041 = vmatpush1.msra.mxu0 %v1040
    %1042 = vmatprep.subr.mxu0 0.0
    %v1043 = vand.u32 %v774, 4294901760
    %v1044 = vsub.f32 %v774, %v1043
    %1045 = vmatpush1.msra.mxu0 %v1044
    %1046 = vmatprep.subr.mxu0 0.0
    %v1047 = vand.u32 %v775, 4294901760
    %v1048 = vsub.f32 %v775, %v1047
    %1049 = vmatpush1.msra.mxu0 %v1048
    %1050 = vmatprep.subr.mxu0 0.0
    %v1051 = vand.u32 %v776, 4294901760
    %v1052 = vsub.f32 %v776, %v1051
    %1053 = vmatpush1.msra.mxu0 %v1052
    %1054 = vmatprep.subr.mxu0 0.0
    %v1055 = vand.u32 %v777, 4294901760
    %v1056 = vsub.f32 %v777, %v1055
    %1057 = vmatpush1.msra.mxu0 %v1056
    %1058 = vmatprep.subr.mxu0 0.0
    %v1059 = vand.u32 %v778, 4294901760
    %v1060 = vsub.f32 %v778, %v1059
    %1061 = vmatpush1.msra.mxu0 %v1060
    %1062 = vmatprep.subr.mxu0 0.0
    %v1063 = vand.u32 %v779, 4294901760
    %v1064 = vsub.f32 %v779, %v1063
    %1065 = vmatpush1.msra.mxu0 %v1064
    %1066 = vmatprep.subr.mxu0 0.0
    %v1067 = vand.u32 %v780, 4294901760
    %v1068 = vsub.f32 %v780, %v1067
    %1069 = vmatpush1.msra.mxu0 %v1068
    %1070 = vmatprep.subr.mxu0 0.0
    %v1071 = vand.u32 %v781, 4294901760
    %v1072 = vsub.f32 %v781, %v1071
    %1073 = vmatpush1.msra.mxu0 %v1072
    %1074 = vmatprep.subr.mxu0 0.0
    %v1075 = vand.u32 %v782, 4294901760
    %v1076 = vsub.f32 %v782, %v1075
    %1077 = vmatpush1.msra.mxu0 %v1076
    %1078 = vmatprep.subr.mxu0 0.0
    %v1079 = vand.u32 %v783, 4294901760
    %v1080 = vsub.f32 %v783, %v1079
    %1081 = vmatpush1.msra.mxu0 %v1080
    %1082 = vmatprep.subr.mxu0 0.0
    %v1083 = vand.u32 %v784, 4294901760
    %v1084 = vsub.f32 %v784, %v1083
    %1085 = vmatpush1.msra.mxu0 %v1084
    %1086 = vmatprep.subr.mxu0 0.0
    %v1087 = vand.u32 %v785, 4294901760
    %v1088 = vsub.f32 %v785, %v1087
    %1089 = vmatpush1.msra.mxu0 %v1088
    %1090 = vmatprep.subr.mxu0 0.0
    %v1091 = vand.u32 %v786, 4294901760
    %v1092 = vsub.f32 %v786, %v1091
    %1093 = vmatpush1.msra.mxu0 %v1092
    %1094 = vmatprep.subr.mxu0 0.0
    %v1095 = vand.u32 %v787, 4294901760
    %v1096 = vsub.f32 %v787, %v1095
    %1097 = vmatpush1.msra.mxu0 %v1096
    %1098 = vmatprep.subr.mxu0 0.0
    %v1099 = vand.u32 %v788, 4294901760
    %v1100 = vsub.f32 %v788, %v1099
    %1101 = vmatpush1.msra.mxu0 %v1100
    %1102 = vmatprep.subr.mxu0 0.0
    %1103 = vmatpush1.msra.mxu0 0.0
    %1104 = vmatprep.subr.mxu0 0.0
    %1105 = vmatpush1.msra.mxu0 0.0
    %1106 = vmatprep.subr.mxu0 0.0
    %1107 = vmatpush1.msra.mxu0 0.0
    %1108 = vmatprep.subr.mxu0 0.0
    %1109 = vmatpush1.msra.mxu0 0.0
    %1110 = vmatprep.subr.mxu0 0.0
    %1111 = vmatpush1.msra.mxu0 0.0
    %1112 = vmatprep.subr.mxu0 0.0
    %1113 = vmatpush1.msra.mxu0 0.0
    %1114 = vmatprep.subr.mxu0 0.0
    %1115 = vmatpush1.msra.mxu0 0.0
    %1116 = vmatprep.subr.mxu0 0.0
    %1117 = vmatpush1.msra.mxu0 0.0
    %1118 = vmatprep.subr.mxu0 0.0
    %1119 = vmatpush1.msra.mxu0 0.0
    %1120 = vmatprep.subr.mxu0 0.0
    %1121 = vmatpush1.msra.mxu0 0.0
    %1122 = vmatprep.subr.mxu0 0.0
    %1123 = vmatpush1.msra.mxu0 0.0
    %1124 = vmatprep.subr.mxu0 0.0
    %1125 = vmatpush1.msra.mxu0 0.0
    %1126 = vmatprep.subr.mxu0 0.0
    %1127 = vmatpush1.msra.mxu0 0.0
    %1128 = vmatprep.subr.mxu0 0.0
    %1129 = vmatpush1.msra.mxu0 0.0
    %1130 = vmatprep.subr.mxu0 0.0
    %1131 = vmatpush1.msra.mxu0 0.0
    %1132 = vmatprep.subr.mxu0 0.0
    %1133 = vmatpush1.msra.mxu0 0.0
    %1134 = vmatprep.mubr.f32.mxu0 0.0
    %v1135 = vand.u32 %v772, 4294901760
    %v1136 = vsub.f32 %v772, %v1135
    %1137 = vmatmul.mubr.f32.gmra.mrb[0].mxu0 %v1136
    %v1138 = vpop.f32.mrb[0].mxu0
    %v1139 = vadd.f32 %v1035, %v1138
    %v1140 = vpop.f32.mrb[0].mxu0
    %1141 = vdwg.mxu0
    %1142 = vmatprep.subr.mxu0 0.0
    %v1143 = vand.u32 %v773, 4294901760
    %1144 = vmatpush1.msra.mxu0 %v1143
    %1145 = vmatprep.subr.mxu0 0.0
    %v1146 = vand.u32 %v774, 4294901760
    %1147 = vmatpush1.msra.mxu0 %v1146
    %1148 = vmatprep.subr.mxu0 0.0
    %v1149 = vand.u32 %v775, 4294901760
    %1150 = vmatpush1.msra.mxu0 %v1149
    %1151 = vmatprep.subr.mxu0 0.0
    %v1152 = vand.u32 %v776, 4294901760
    %1153 = vmatpush1.msra.mxu0 %v1152
    %1154 = vmatprep.subr.mxu0 0.0
    %v1155 = vand.u32 %v777, 4294901760
    %1156 = vmatpush1.msra.mxu0 %v1155
    %1157 = vmatprep.subr.mxu0 0.0
    %v1158 = vand.u32 %v778, 4294901760
    %1159 = vmatpush1.msra.mxu0 %v1158
    %1160 = vmatprep.subr.mxu0 0.0
    %v1161 = vand.u32 %v779, 4294901760
    %1162 = vmatpush1.msra.mxu0 %v1161
    %1163 = vmatprep.subr.mxu0 0.0
    %v1164 = vand.u32 %v780, 4294901760
    %1165 = vmatpush1.msra.mxu0 %v1164
    %1166 = vmatprep.subr.mxu0 0.0
    %v1167 = vand.u32 %v781, 4294901760
    %1168 = vmatpush1.msra.mxu0 %v1167
    %1169 = vmatprep.subr.mxu0 0.0
    %v1170 = vand.u32 %v782, 4294901760
    %1171 = vmatpush1.msra.mxu0 %v1170
    %1172 = vmatprep.subr.mxu0 0.0
    %v1173 = vand.u32 %v783, 4294901760
    %1174 = vmatpush1.msra.mxu0 %v1173
    %1175 = vmatprep.subr.mxu0 0.0
    %v1176 = vand.u32 %v784, 4294901760
    %1177 = vmatpush1.msra.mxu0 %v1176
    %1178 = vmatprep.subr.mxu0 0.0
    %v1179 = vand.u32 %v785, 4294901760
    %1180 = vmatpush1.msra.mxu0 %v1179
    %1181 = vmatprep.subr.mxu0 0.0
    %v1182 = vand.u32 %v786, 4294901760
    %1183 = vmatpush1.msra.mxu0 %v1182
    %1184 = vmatprep.subr.mxu0 0.0
    %v1185 = vand.u32 %v787, 4294901760
    %1186 = vmatpush1.msra.mxu0 %v1185
    %1187 = vmatprep.subr.mxu0 0.0
    %v1188 = vand.u32 %v788, 4294901760
    %1189 = vmatpush1.msra.mxu0 %v1188
    %1190 = vmatprep.subr.mxu0 0.0
    %1191 = vmatpush1.msra.mxu0 0.0
    %1192 = vmatprep.subr.mxu0 0.0
    %1193 = vmatpush1.msra.mxu0 0.0
    %1194 = vmatprep.subr.mxu0 0.0
    %1195 = vmatpush1.msra.mxu0 0.0
    %1196 = vmatprep.subr.mxu0 0.0
    %1197 = vmatpush1.msra.mxu0 0.0
    %1198 = vmatprep.subr.mxu0 0.0
    %1199 = vmatpush1.msra.mxu0 0.0
    %1200 = vmatprep.subr.mxu0 0.0
    %1201 = vmatpush1.msra.mxu0 0.0
    %1202 = vmatprep.subr.mxu0 0.0
    %1203 = vmatpush1.msra.mxu0 0.0
    %1204 = vmatprep.subr.mxu0 0.0
    %1205 = vmatpush1.msra.mxu0 0.0
    %1206 = vmatprep.subr.mxu0 0.0
    %1207 = vmatpush1.msra.mxu0 0.0
    %1208 = vmatprep.subr.mxu0 0.0
    %1209 = vmatpush1.msra.mxu0 0.0
    %1210 = vmatprep.subr.mxu0 0.0
    %1211 = vmatpush1.msra.mxu0 0.0
    %1212 = vmatprep.subr.mxu0 0.0
    %1213 = vmatpush1.msra.mxu0 0.0
    %1214 = vmatprep.subr.mxu0 0.0
    %1215 = vmatpush1.msra.mxu0 0.0
    %1216 = vmatprep.subr.mxu0 0.0
    %1217 = vmatpush1.msra.mxu0 0.0
    %1218 = vmatprep.subr.mxu0 0.0
    %1219 = vmatpush1.msra.mxu0 0.0
    %1220 = vmatprep.subr.mxu0 0.0
    %1221 = vmatpush1.msra.mxu0 0.0
    %1222 = vmatprep.mubr.f32.mxu0 0.0
    %v1223 = vand.u32 %v772, 4294901760
    %v1224 = vsub.f32 %v772, %v1223
    %v1225 = vand.u32 %v1224, 4294901760
    %1226 = vmatmul.mubr.f32.gmra.mrb[0].mxu0 %v1225
    %v1227 = vpop.f32.mrb[0].mxu0
    %v1228 = vadd.f32 %v1139, %v1227
    %v1229 = vpop.f32.mrb[0].mxu0
    %1230 = vdwg.mxu0
    %1231 = vmatprep.subr.mxu0 0.0
    %v1232 = vand.u32 %v773, 4294901760
    %v1233 = vsub.f32 %v773, %v1232
    %v1234 = vand.u32 %v1233, 4294901760
    %1235 = vmatpush1.msra.mxu0 %v1234
    %1236 = vmatprep.subr.mxu0 0.0
    %v1237 = vand.u32 %v774, 4294901760
    %v1238 = vsub.f32 %v774, %v1237
    %v1239 = vand.u32 %v1238, 4294901760
    %1240 = vmatpush1.msra.mxu0 %v1239
    %1241 = vmatprep.subr.mxu0 0.0
    %v1242 = vand.u32 %v775, 4294901760
    %v1243 = vsub.f32 %v775, %v1242
    %v1244 = vand.u32 %v1243, 4294901760
    %1245 = vmatpush1.msra.mxu0 %v1244
    %1246 = vmatprep.subr.mxu0 0.0
    %v1247 = vand.u32 %v776, 4294901760
    %v1248 = vsub.f32 %v776, %v1247
    %v1249 = vand.u32 %v1248, 4294901760
    %1250 = vmatpush1.msra.mxu0 %v1249
    %1251 = vmatprep.subr.mxu0 0.0
    %v1252 = vand.u32 %v777, 4294901760
    %v1253 = vsub.f32 %v777, %v1252
    %v1254 = vand.u32 %v1253, 4294901760
    %1255 = vmatpush1.msra.mxu0 %v1254
    %1256 = vmatprep.subr.mxu0 0.0
    %v1257 = vand.u32 %v778, 4294901760
    %v1258 = vsub.f32 %v778, %v1257
    %v1259 = vand.u32 %v1258, 4294901760
    %1260 = vmatpush1.msra.mxu0 %v1259
    %1261 = vmatprep.subr.mxu0 0.0
    %v1262 = vand.u32 %v779, 4294901760
    %v1263 = vsub.f32 %v779, %v1262
    %v1264 = vand.u32 %v1263, 4294901760
    %1265 = vmatpush1.msra.mxu0 %v1264
    %1266 = vmatprep.subr.mxu0 0.0
    %v1267 = vand.u32 %v780, 4294901760
    %v1268 = vsub.f32 %v780, %v1267
    %v1269 = vand.u32 %v1268, 4294901760
    %1270 = vmatpush1.msra.mxu0 %v1269
    %1271 = vmatprep.subr.mxu0 0.0
    %v1272 = vand.u32 %v781, 4294901760
    %v1273 = vsub.f32 %v781, %v1272
    %v1274 = vand.u32 %v1273, 4294901760
    %1275 = vmatpush1.msra.mxu0 %v1274
    %1276 = vmatprep.subr.mxu0 0.0
    %v1277 = vand.u32 %v782, 4294901760
    %v1278 = vsub.f32 %v782, %v1277
    %v1279 = vand.u32 %v1278, 4294901760
    %1280 = vmatpush1.msra.mxu0 %v1279
    %1281 = vmatprep.subr.mxu0 0.0
    %v1282 = vand.u32 %v783, 4294901760
    %v1283 = vsub.f32 %v783, %v1282
    %v1284 = vand.u32 %v1283, 4294901760
    %1285 = vmatpush1.msra.mxu0 %v1284
    %1286 = vmatprep.subr.mxu0 0.0
    %v1287 = vand.u32 %v784, 4294901760
    %v1288 = vsub.f32 %v784, %v1287
    %v1289 = vand.u32 %v1288, 4294901760
    %1290 = vmatpush1.msra.mxu0 %v1289
    %1291 = vmatprep.subr.mxu0 0.0
    %v1292 = vand.u32 %v785, 4294901760
    %v1293 = vsub.f32 %v785, %v1292
    %v1294 = vand.u32 %v1293, 4294901760
    %1295 = vmatpush1.msra.mxu0 %v1294
    %1296 = vmatprep.subr.mxu0 0.0
    %v1297 = vand.u32 %v786, 4294901760
    %v1298 = vsub.f32 %v786, %v1297
    %v1299 = vand.u32 %v1298, 4294901760
    %1300 = vmatpush1.msra.mxu0 %v1299
    %1301 = vmatprep.subr.mxu0 0.0
    %v1302 = vand.u32 %v787, 4294901760
    %v1303 = vsub.f32 %v787, %v1302
    %v1304 = vand.u32 %v1303, 4294901760
    %1305 = vmatpush1.msra.mxu0 %v1304
    %1306 = vmatprep.subr.mxu0 0.0
    %v1307 = vand.u32 %v788, 4294901760
    %v1308 = vsub.f32 %v788, %v1307
    %v1309 = vand.u32 %v1308, 4294901760
    %1310 = vmatpush1.msra.mxu0 %v1309
    %1311 = vmatprep.subr.mxu0 0.0
    %1312 = vmatpush1.msra.mxu0 0.0
    %1313 = vmatprep.subr.mxu0 0.0
    %1314 = vmatpush1.msra.mxu0 0.0
    %1315 = vmatprep.subr.mxu0 0.0
    %1316 = vmatpush1.msra.mxu0 0.0
    %1317 = vmatprep.subr.mxu0 0.0
    %1318 = vmatpush1.msra.mxu0 0.0
    %1319 = vmatprep.subr.mxu0 0.0
    %1320 = vmatpush1.msra.mxu0 0.0
    %1321 = vmatprep.subr.mxu0 0.0
    %1322 = vmatpush1.msra.mxu0 0.0
    %1323 = vmatprep.subr.mxu0 0.0
    %1324 = vmatpush1.msra.mxu0 0.0
    %1325 = vmatprep.subr.mxu0 0.0
    %1326 = vmatpush1.msra.mxu0 0.0
    %1327 = vmatprep.subr.mxu0 0.0
    %1328 = vmatpush1.msra.mxu0 0.0
    %1329 = vmatprep.subr.mxu0 0.0
    %1330 = vmatpush1.msra.mxu0 0.0
    %1331 = vmatprep.subr.mxu0 0.0
    %1332 = vmatpush1.msra.mxu0 0.0
    %1333 = vmatprep.subr.mxu0 0.0
    %1334 = vmatpush1.msra.mxu0 0.0
    %1335 = vmatprep.subr.mxu0 0.0
    %1336 = vmatpush1.msra.mxu0 0.0
    %1337 = vmatprep.subr.mxu0 0.0
    %1338 = vmatpush1.msra.mxu0 0.0
    %1339 = vmatprep.subr.mxu0 0.0
    %1340 = vmatpush1.msra.mxu0 0.0
    %1341 = vmatprep.subr.mxu0 0.0
    %1342 = vmatpush1.msra.mxu0 0.0
    %1343 = vmatprep.mubr.f32.mxu0 0.0
    %v1344 = vand.u32 %v772, 4294901760
    %1345 = vmatmul.mubr.f32.gmra.mrb[0].mxu0 %v1344
    %v1346 = vpop.f32.mrb[0].mxu0
    %v1347 = vadd.f32 %v1228, %v1346
    %v1348 = vpop.f32.mrb[0].mxu0
    %1349 = vdwg.mxu0
    %1350 = vmatprep.subr.mxu0 0.0
    %v1351 = vand.u32 %v773, 4294901760
    %1352 = vmatpush1.msra.mxu0 %v1351
    %1353 = vmatprep.subr.mxu0 0.0
    %v1354 = vand.u32 %v774, 4294901760
    %1355 = vmatpush1.msra.mxu0 %v1354
    %1356 = vmatprep.subr.mxu0 0.0
    %v1357 = vand.u32 %v775, 4294901760
    %1358 = vmatpush1.msra.mxu0 %v1357
    %1359 = vmatprep.subr.mxu0 0.0
    %v1360 = vand.u32 %v776, 4294901760
    %1361 = vmatpush1.msra.mxu0 %v1360
    %1362 = vmatprep.subr.mxu0 0.0
    %v1363 = vand.u32 %v777, 4294901760
    %1364 = vmatpush1.msra.mxu0 %v1363
    %1365 = vmatprep.subr.mxu0 0.0
    %v1366 = vand.u32 %v778, 4294901760
    %1367 = vmatpush1.msra.mxu0 %v1366
    %1368 = vmatprep.subr.mxu0 0.0
    %v1369 = vand.u32 %v779, 4294901760
    %1370 = vmatpush1.msra.mxu0 %v1369
    %1371 = vmatprep.subr.mxu0 0.0
    %v1372 = vand.u32 %v780, 4294901760
    %1373 = vmatpush1.msra.mxu0 %v1372
    %1374 = vmatprep.subr.mxu0 0.0
    %v1375 = vand.u32 %v781, 4294901760
    %1376 = vmatpush1.msra.mxu0 %v1375
    %1377 = vmatprep.subr.mxu0 0.0
    %v1378 = vand.u32 %v782, 4294901760
    %1379 = vmatpush1.msra.mxu0 %v1378
    %1380 = vmatprep.subr.mxu0 0.0
    %v1381 = vand.u32 %v783, 4294901760
    %1382 = vmatpush1.msra.mxu0 %v1381
    %1383 = vmatprep.subr.mxu0 0.0
    %v1384 = vand.u32 %v784, 4294901760
    %1385 = vmatpush1.msra.mxu0 %v1384
    %1386 = vmatprep.subr.mxu0 0.0
    %v1387 = vand.u32 %v785, 4294901760
    %1388 = vmatpush1.msra.mxu0 %v1387
    %1389 = vmatprep.subr.mxu0 0.0
    %v1390 = vand.u32 %v786, 4294901760
    %1391 = vmatpush1.msra.mxu0 %v1390
    %1392 = vmatprep.subr.mxu0 0.0
    %v1393 = vand.u32 %v787, 4294901760
    %1394 = vmatpush1.msra.mxu0 %v1393
    %1395 = vmatprep.subr.mxu0 0.0
    %v1396 = vand.u32 %v788, 4294901760
    %1397 = vmatpush1.msra.mxu0 %v1396
    %1398 = vmatprep.subr.mxu0 0.0
    %1399 = vmatpush1.msra.mxu0 0.0
    %1400 = vmatprep.subr.mxu0 0.0
    %1401 = vmatpush1.msra.mxu0 0.0
    %1402 = vmatprep.subr.mxu0 0.0
    %1403 = vmatpush1.msra.mxu0 0.0
    %1404 = vmatprep.subr.mxu0 0.0
    %1405 = vmatpush1.msra.mxu0 0.0
    %1406 = vmatprep.subr.mxu0 0.0
    %1407 = vmatpush1.msra.mxu0 0.0
    %1408 = vmatprep.subr.mxu0 0.0
    %1409 = vmatpush1.msra.mxu0 0.0
    %1410 = vmatprep.subr.mxu0 0.0
    %1411 = vmatpush1.msra.mxu0 0.0
    %1412 = vmatprep.subr.mxu0 0.0
    %1413 = vmatpush1.msra.mxu0 0.0
    %1414 = vmatprep.subr.mxu0 0.0
    %1415 = vmatpush1.msra.mxu0 0.0
    %1416 = vmatprep.subr.mxu0 0.0
    %1417 = vmatpush1.msra.mxu0 0.0
    %1418 = vmatprep.subr.mxu0 0.0
    %1419 = vmatpush1.msra.mxu0 0.0
    %1420 = vmatprep.subr.mxu0 0.0
    %1421 = vmatpush1.msra.mxu0 0.0
    %1422 = vmatprep.subr.mxu0 0.0
    %1423 = vmatpush1.msra.mxu0 0.0
    %1424 = vmatprep.subr.mxu0 0.0
    %1425 = vmatpush1.msra.mxu0 0.0
    %1426 = vmatprep.subr.mxu0 0.0
    %1427 = vmatpush1.msra.mxu0 0.0
    %1428 = vmatprep.subr.mxu0 0.0
    %1429 = vmatpush1.msra.mxu0 0.0
    %1430 = vmatprep.mubr.f32.mxu0 0.0
    %v1431 = vand.u32 %v772, 4294901760
    %1432 = vmatmul.mubr.f32.gmra.mrb[0].mxu0 %v1431
    %v1433 = vpop.f32.mrb[0].mxu0
    %v1434 = vadd.f32 %v1347, %v1433
    %v1435 = vpop.f32.mrb[0].mxu0
    %1436 = vdwg.mxu0
    %v1437 = vlaneseq
    %v1438 = vand.u32 %v1437, 127
    %1439 = vmax.xlane.f32.xlu0 %v1434
    %v1440 = vpop.xlane.xlu0 %1439
    %vm1441 = vcmp.eq.f32.partialorder %v1434, %v1440
    %v1442 = vsel %vm1441, %v1438, 128
    %v1443 = vand.u32 %v1442, 65535
    %v1444 = vshra.s32 %v1442, 16
    %v1445 = vcvt.s32.f32 %v1443
    %v1446 = vcvt.s32.f32 %v1444
    %1447 = vmin.xlane.f32.xlu0 %v1446
    %v1448 = vpop.xlane.xlu0 %1447
    %vm1449 = vcmp.eq.f32.partialorder %v1446, %v1448
    %v1450 = vsel %vm1449, %v1445, inf
    %1451 = vmin.xlane.f32.xlu0 %v1450
    %v1452 = vpop.xlane.xlu0 %1451
    %v1453 = vcvt.f32.s32 %v1452
    %v1454 = vcvt.f32.s32 %v1448
    %v1455 = vshll.u32 %v1454, 16
    %v1456 = vadd.s32 %v1455, %v1453
    %1457 = vst [vmem:[#allocation7] sm:$0xff] %v1434
    %vm1458 = vcmask 7168
    %1459 = vst.msk [vmem:[%s8] sm:$0xff] %vm1458, %v1456
    // Predicated region
    $region38: #{tpu_custom_call.1} parent=1 // pred_check
      _
    $region39: #{tpu_custom_call.1} parent=1 // pred_check_branch
      %1461 = sbr.rel (0) target = $region41
    $region40: #{tpu_custom_call.1} parent=1 // pred_region
      %s1463 = ssub.s32 128, 128
      %1464 = vsyncadd [#allocation4], %s1463
      %s1466 = sshll.u32 [#allocation7], 4
      %s1467 = int_to_ptr.vmem [resolvable:$true] %s1466
      %1469 = dma.vmem_to_hbm [thread:$0]  %s1467, 128, %s7, [#allocation4]
    $region41: #{tpu_custom_call.1} parent=1 // pred_fallthru
      _
    // Predicated region
    $region42: #{tpu_custom_call.1} parent=1 // pred_check
      _
    $region43: #{tpu_custom_call.1} parent=1 // pred_check_branch
      %1471 = sbr.rel (0) target = $region45
    $region44: #{tpu_custom_call.1} parent=1 // pred_region
      _
    $region45: #{tpu_custom_call.1} parent=1 // pred_fallthru
      _
    // Predicated region
    $region46: #{tpu_custom_call.1} parent=1 // pred_check
      _
    $region47: #{tpu_custom_call.1} parent=1 // pred_check_branch
      %1473 = sbr.rel (0) target = $region49
    $region48: #{tpu_custom_call.1} parent=1 // pred_region
      %1474 = dma.done [#allocation4], 128
    $region49: #{tpu_custom_call.1} parent=1 // pred_fallthru
      _
    // Predicated region
    $region50: #{tpu_custom_call.1} parent=1 // pred_check
      _
    $region51: #{tpu_custom_call.1} parent=1 // pred_check_branch
      %1476 = sbr.rel (0) target = $region53
    $region52: #{tpu_custom_call.1} parent=1 // pred_region
      _
    $region53: #{tpu_custom_call.1} parent=1 // pred_fallthru
      _
    %1477 = vsyncpa [#allocation3], 1
    %1478 = vsyncpa [#allocation6], 1
    %1479 = vsyncpa [#allocation4], 1

</llo_original>
